<compile_context>
chip_gen: v6e
topology: v6e:2x2x1
jax: 0.10.0
libtpu: 0.0.40
codegen_flags: <defaults>
</compile_context>

<pallas_src>
import functools
import math

import jax
import jax.numpy as jnp
from jax.experimental import pallas as pl
from jax.experimental.pallas import tpu as pltpu


def _modconv_dw_kernel(x_ref, wm_ref, ws_ref, bm_ref, bs_ref, o_ref, xpad_ref,
                       *, ts, use_roll):
    """Fused depthwise ModConv on one (channel-block, batch) tile.

    x_ref:    (CB, H, W)       input tile (NCHW layout, batch dim squeezed)
    wm_ref:   (CB, KH, KW)     'multi' depthwise taps (natural shape)
    ws_ref:   (CB, KH, KW)     'sum'   depthwise taps
    bm_ref:   (CB, 1, 1)       'multi' bias
    bs_ref:   (CB, 1, 1)       'sum'   bias
    o_ref:    (CB, H, W)       output tile
    xpad_ref: (CB, H+2p, W[+2p]) VMEM staging scratch (W padded only on the
              misaligned fallback path)
    """
    CB, H, W = x_ref.shape
    KH, KW = wm_ref.shape[1], wm_ref.shape[2]
    ph, pw = (KH - 1) // 2, (KW - 1) // 2
    pw_pad = 0 if use_roll else pw
    Wp = W + 2 * pw_pad
    n_slabs = H // ts

    # ---- stage the tile into the padded scratch; zero ONLY the halo ---------
    if ph > 0:
        xpad_ref[:, :ph, :] = jnp.zeros((CB, ph, Wp), xpad_ref.dtype)
        xpad_ref[:, ph + H:, :] = jnp.zeros((CB, ph, Wp), xpad_ref.dtype)
    if pw_pad > 0:
        xpad_ref[:, ph:ph + H, :pw_pad] = jnp.zeros((CB, H, pw_pad), xpad_ref.dtype)
        xpad_ref[:, ph:ph + H, pw_pad + W:] = jnp.zeros((CB, H, pw_pad), xpad_ref.dtype)
    xpad_ref[:, ph:ph + H, pw_pad:pw_pad + W] = x_ref[...]

    # ---- per-channel taps / biases as (CB,1,1) f32, hoisted out of the loops -
    wm = [[wm_ref[:, kh:kh + 1, kw:kw + 1].astype(jnp.float32) for kw in range(KW)]
          for kh in range(KH)]
    ws = [[ws_ref[:, kh:kh + 1, kw:kw + 1].astype(jnp.float32) for kw in range(KW)]
          for kh in range(KH)]
    bm = bm_ref[...].astype(jnp.float32)
    bs = bs_ref[...].astype(jnp.float32)

    # ---- hoisted W-border masks for the roll path ----------------------------
    w_mask = {}
    if use_roll and pw > 0:
        col = jax.lax.broadcasted_iota(jnp.int32, (CB, ts, W), 2)
        for dw in range(-pw, pw + 1):
            if dw > 0:
                w_mask[dw] = col < (W - dw)
            elif dw < 0:
                w_mask[dw] = col >= (-dw)

    def slab(s, carry):
        r0 = pl.multiple_of(s * ts, ts)
        # bias-initialized f32 accumulators (slab-sized, stay in vregs)
        acc_m = jnp.broadcast_to(bm, (CB, ts, W))
        acc_s = jnp.broadcast_to(bs, (CB, ts, W))
        x_rows = None
        rows = None
        for kh in range(KH):
            if use_roll:
                # lane-aligned slab of H-shifted rows, shared by all kw
                rows = xpad_ref[:, pl.ds(r0 + kh, ts), :].astype(jnp.float32)
            for kw in range(KW):
                dw = kw - pw
                if use_roll:
                    if dw == 0:
                        tap = rows
                    else:
                        rolled = pltpu.roll(rows, (-dw) % W, axis=2)  # XLU slot
                        tap = jnp.where(w_mask[dw], rolled, 0.0)
                else:
                    # fallback: static (possibly lane-misaligned) slice of the
                    # W-padded scratch
                    tap = xpad_ref[:, pl.ds(r0 + kh, ts), kw:kw + W].astype(jnp.float32)
                if kh == ph and kw == pw:
                    x_rows = tap                      # center tap == x (residual)
                acc_m = acc_m + tap * wm[kh][kw]
                acc_s = acc_s + tap * ws[kh][kw]
        # sigmoid via tanh: EUP transcendental, no f32 VALU divide
        gate = 0.5 * jnp.tanh(0.5 * acc_m) + 0.5
        o_ref[:, pl.ds(r0, ts), :] = (gate * x_rows + acc_s).astype(o_ref.dtype)
        return carry

    jax.lax.fori_loop(0, n_slabs, slab, 0, unroll=(n_slabs <= 8))


def _largest_divisor_leq(n, cap):
    cap = max(1, min(n, cap))
    for d in range(cap, 0, -1):
        if n % d == 0:
            return d
    return 1


def _pick_h_slab(h):
    for cand in (16, 8, 32, 64, 4, 2, 1):
        if cand <= h and h % cand == 0:
            return cand
    return h


def mod_conv(x, w_multi, b_multi, w_sum, b_sum, *, mod_groups=-1,
             channel_block=None):
    """Forward of ModConv: sigmoid(conv_multi(x)) * x + conv_sum(x).

    x:                 (N, ngf, H, W)            NCHW (PyTorch layout)
    w_multi / w_sum:   (ngf, 1, mod_ks, mod_ks)  depthwise Conv2d weights
    b_multi / b_sum:   (ngf,)
    returns:           (N, ngf, H, W)
    """
    N, C, H, W = x.shape
    groups = C if mod_groups == -1 else mod_groups
    if groups != C:
        # TODO(synk): grouped (mod_groups != -1) ModConv needs per-group channel
        # mixing (block-diagonal MXU matmul); only the depthwise configuration
        # (mod_groups = -1, i.e. groups = ngf) is implemented as a Pallas kernel.
        raise NotImplementedError("mod_conv Pallas kernel supports mod_groups=-1 only")

    KH, KW = w_multi.shape[-2], w_multi.shape[-1]
    assert w_multi.shape == (C, 1, KH, KW) and w_sum.shape == (C, 1, KH, KW)
    assert b_multi.shape == (C,) and b_sum.shape == (C,)
    assert KH % 2 == 1 and KW % 2 == 1, "odd mod_ks assumed ('same' padding)"
    ph, pw = (KH - 1) // 2, (KW - 1) // 2

    use_roll = (W % 128 == 0)          # lane-aligned W -> XLU roll path
    pw_pad = 0 if use_roll else pw
    ts = _pick_h_slab(H)

    # ---- generation-aware VMEM budget -> channel block size ------------------
    try:
        vmem_phys = int(pltpu.get_tpu_info().vmem_capacity_bytes)
    except Exception:
        vmem_phys = 64 * 1024 * 1024   # v7x per-core size: safe on all generations
    vmem_budget = int(vmem_phys * 0.60)
    vmem_limit = min(int(vmem_phys * 0.90), 128 * 1024 * 1024)

    itemsize = x.dtype.itemsize
    per_chan = 2 * 2 * H * W * itemsize                        # in + out, double-buffered
    per_chan += (H + 2 * ph) * (W + 2 * pw_pad) * itemsize     # staging scratch
    per_chan += 4 * 2 * 8 * 128 * 4                            # padded weight/bias tiles
    per_chan += 8 * ts * W * 4                                 # slab-sized f32 live temps

    if channel_block is not None:
        cb = channel_block
        assert C % cb == 0
    else:
        cb = _largest_divisor_leq(C, max(1, vmem_budget // per_chan))
        # v7x megacore: keep at least 2 parallel grid steps when possible
        if N * (C // cb) < 2 and C > 1:
            cb = _largest_divisor_leq(C, max(1, C // 2))

    grid = (C // cb, N)   # batch innermost: weight/bias blocks are not re-fetched

    # Tiny parameter reshapes only (no W pre-broadcast, no activation pad pass).
    wm = jnp.reshape(w_multi, (C, KH, KW))
    ws = jnp.reshape(w_sum, (C, KH, KW))
    bm = jnp.reshape(b_multi, (C, 1, 1))
    bs = jnp.reshape(b_sum, (C, 1, 1))

    kernel = functools.partial(_modconv_dw_kernel, ts=ts, use_roll=use_roll)

    return pl.pallas_call(
        kernel,
        out_shape=jax.ShapeDtypeStruct((N, C, H, W), x.dtype),
        grid=grid,
        in_specs=[
            pl.BlockSpec((pl.Squeezed(), cb, H, W), lambda c, n: (n, c, 0, 0)),
            pl.BlockSpec((cb, KH, KW), lambda c, n: (c, 0, 0)),
            pl.BlockSpec((cb, KH, KW), lambda c, n: (c, 0, 0)),
            pl.BlockSpec((cb, 1, 1), lambda c, n: (c, 0, 0)),
            pl.BlockSpec((cb, 1, 1), lambda c, n: (c, 0, 0)),
        ],
        out_specs=pl.BlockSpec((pl.Squeezed(), cb, H, W), lambda c, n: (n, c, 0, 0)),
        scratch_shapes=[pltpu.VMEM((cb, H + 2 * ph, W + 2 * pw_pad), x.dtype)],
        compiler_params=pltpu.CompilerParams(
            dimension_semantics=("parallel", "parallel"),
            vmem_limit_bytes=vmem_limit),
    )(x, wm, ws, bm, bs)


if __name__ == "__main__":
    # ModConv kargs: mod_ks=3, mod_groups=-1 (depthwise), ngf=4
    mod_ks, mod_groups, ngf = 3, -1, 4
    N, H, W = 2, 16, 16

    key = jax.random.PRNGKey(0)
    kx, k1, k2, k3, k4 = jax.random.split(key, 5)
    x = jax.random.normal(kx, (N, ngf, H, W), dtype=jnp.float32)

    # deterministic synthetic parameters (Conv2d depthwise weight: (out, 1, kh, kw))
    fan_in = 1 * mod_ks * mod_ks
    bound = 1.0 / math.sqrt(fan_in)
    w_multi = jax.random.uniform(k1, (ngf, 1, mod_ks, mod_ks), jnp.float32, -bound, bound)
    b_multi = jax.random.uniform(k2, (ngf,), jnp.float32, -bound, bound)
    w_sum = jax.random.uniform(k3, (ngf, 1, mod_ks, mod_ks), jnp.float32, -bound, bound)
    b_sum = jax.random.uniform(k4, (ngf,), jnp.float32, -bound, bound)

    out = mod_conv(x, w_multi, b_multi, w_sum, b_sum, mod_groups=mod_groups)
    out = jax.block_until_ready(out)

    # reference: XLA grouped conv + sigmoid gate + residual
    pad = (mod_ks - 1) // 2

    def dw_conv(inp, w, b):
        y = jax.lax.conv_general_dilated(
            inp, w, window_strides=(1, 1),
            padding=((pad, pad), (pad, pad)),
            dimension_numbers=("NCHW", "OIHW", "NCHW"),
            feature_group_count=ngf)
        return y + b[None, :, None, None]

    ref = jax.nn.sigmoid(dw_conv(x, w_multi, b_multi)) * x + dw_conv(x, w_sum, b_sum)

    assert out.shape == (N, ngf, H, W)
    err = float(jnp.max(jnp.abs(out - ref)))
    assert jnp.allclose(out, ref, rtol=1e-4, atol=1e-5), err

    print("KERNEL_OK")
</pallas_src>

<mosaic_0001>
module attributes {stable_mosaic.version = 11 : i64} {
  func.func @_modconv_dw_kernel(%arg0: i32, %arg1: i32, %arg2: memref<1x4x16x16xf32, #tpu.memory_space<vmem>>, %arg3: memref<4x3x3xf32, #tpu.memory_space<vmem>>, %arg4: memref<4x3x3xf32, #tpu.memory_space<vmem>>, %arg5: memref<4x1x1xf32, #tpu.memory_space<vmem>>, %arg6: memref<4x1x1xf32, #tpu.memory_space<vmem>>, %arg7: memref<1x4x16x16xf32, #tpu.memory_space<vmem>>, %arg8: memref<4x18x18xf32, #tpu.memory_space<vmem>>) attributes {dimension_semantics = [#tpu.dimension_semantics<parallel>, #tpu.dimension_semantics<parallel>], iteration_bounds = array<i64: 1, 2>, scalar_prefetch = 0 : i64, scratch_operands = 1 : i64, tpu.core_type = #tpu.core_type<tc>, window_params = [{transform_indices = @transform_0, window_bounds = array<i64: 1, 4, 16, 16>}, {transform_indices = @transform_1, window_bounds = array<i64: 4, 3, 3>}, {transform_indices = @transform_2, window_bounds = array<i64: 4, 3, 3>}, {transform_indices = @transform_3, window_bounds = array<i64: 4, 1, 1>}, {transform_indices = @transform_4, window_bounds = array<i64: 4, 1, 1>}, {transform_indices = @transform_5, window_bounds = array<i64: 1, 4, 16, 16>}]} {
    %cst = arith.constant 0.000000e+00 : f32
    %0 = vector.broadcast %cst : f32 to vector<4x1x18xf32>
    %c0 = arith.constant 0 : index
    %c0_0 = arith.constant 0 : index
    %c0_1 = arith.constant 0 : index
    %1 = vector.load %arg8[%c0, %c0_0, %c0_1] : memref<4x18x18xf32, #tpu.memory_space<vmem>>, vector<4x1x18xf32>
    tpu.vector_store %arg8[%c0, %c0_0, %c0_1], %0 {strides = array<i32>} : memref<4x18x18xf32, #tpu.memory_space<vmem>>, vector<4x1x18xf32>,
    %cst_2 = arith.constant 0.000000e+00 : f32
    %2 = vector.broadcast %cst_2 : f32 to vector<4x1x18xf32>
    %c0_3 = arith.constant 0 : index
    %c17 = arith.constant 17 : index
    %c0_4 = arith.constant 0 : index
    %3 = vector.load %arg8[%c0_3, %c17, %c0_4] : memref<4x18x18xf32, #tpu.memory_space<vmem>>, vector<4x1x18xf32>
    tpu.vector_store %arg8[%c0_3, %c17, %c0_4], %2 {strides = array<i32>} : memref<4x18x18xf32, #tpu.memory_space<vmem>>, vector<4x1x18xf32>,
    %cst_5 = arith.constant 0.000000e+00 : f32
    %4 = vector.broadcast %cst_5 : f32 to vector<4x16x1xf32>
    %c0_6 = arith.constant 0 : index
    %c1 = arith.constant 1 : index
    %c0_7 = arith.constant 0 : index
    %5 = vector.load %arg8[%c0_6, %c1, %c0_7] : memref<4x18x18xf32, #tpu.memory_space<vmem>>, vector<4x16x1xf32>
    tpu.vector_store %arg8[%c0_6, %c1, %c0_7], %4 {strides = array<i32>} : memref<4x18x18xf32, #tpu.memory_space<vmem>>, vector<4x16x1xf32>,
    %cst_8 = arith.constant 0.000000e+00 : f32
    %6 = vector.broadcast %cst_8 : f32 to vector<4x16x1xf32>
    %c0_9 = arith.constant 0 : index
    %c1_10 = arith.constant 1 : index
    %c17_11 = arith.constant 17 : index
    %7 = vector.load %arg8[%c0_9, %c1_10, %c17_11] : memref<4x18x18xf32, #tpu.memory_space<vmem>>, vector<4x16x1xf32>
    tpu.vector_store %arg8[%c0_9, %c1_10, %c17_11], %6 {strides = array<i32>} : memref<4x18x18xf32, #tpu.memory_space<vmem>>, vector<4x16x1xf32>,
    %c0_12 = arith.constant 0 : index
    %c0_13 = arith.constant 0 : index
    %c0_14 = arith.constant 0 : index
    %c0_15 = arith.constant 0 : index
    %8 = vector.load %arg2[%c0_12, %c0_13, %c0_14, %c0_15] : memref<1x4x16x16xf32, #tpu.memory_space<vmem>>, vector<1x4x16x16xf32>
    %9 = vector.shape_cast %8 : vector<1x4x16x16xf32> to vector<4x16x16xf32>
    %c0_16 = arith.constant 0 : index
    %c1_17 = arith.constant 1 : index
    %c1_18 = arith.constant 1 : index
    %10 = vector.load %arg8[%c0_16, %c1_17, %c1_18] : memref<4x18x18xf32, #tpu.memory_space<vmem>>, vector<4x16x16xf32>
    tpu.vector_store %arg8[%c0_16, %c1_17, %c1_18], %9 {strides = array<i32>} : memref<4x18x18xf32, #tpu.memory_space<vmem>>, vector<4x16x16xf32>,
    %c0_19 = arith.constant 0 : index
    %c0_20 = arith.constant 0 : index
    %c0_21 = arith.constant 0 : index
    %11 = vector.load %arg3[%c0_19, %c0_20, %c0_21] : memref<4x3x3xf32, #tpu.memory_space<vmem>>, vector<4x1x1xf32>
    %c0_22 = arith.constant 0 : index
    %c0_23 = arith.constant 0 : index
    %c1_24 = arith.constant 1 : index
    %12 = vector.load %arg3[%c0_22, %c0_23, %c1_24] : memref<4x3x3xf32, #tpu.memory_space<vmem>>, vector<4x1x1xf32>
    %c0_25 = arith.constant 0 : index
    %c0_26 = arith.constant 0 : index
    %c2 = arith.constant 2 : index
    %13 = vector.load %arg3[%c0_25, %c0_26, %c2] : memref<4x3x3xf32, #tpu.memory_space<vmem>>, vector<4x1x1xf32>
    %c0_27 = arith.constant 0 : index
    %c1_28 = arith.constant 1 : index
    %c0_29 = arith.constant 0 : index
    %14 = vector.load %arg3[%c0_27, %c1_28, %c0_29] : memref<4x3x3xf32, #tpu.memory_space<vmem>>, vector<4x1x1xf32>
    %c0_30 = arith.constant 0 : index
    %c1_31 = arith.constant 1 : index
    %c1_32 = arith.constant 1 : index
    %15 = vector.load %arg3[%c0_30, %c1_31, %c1_32] : memref<4x3x3xf32, #tpu.memory_space<vmem>>, vector<4x1x1xf32>
    %c0_33 = arith.constant 0 : index
    %c1_34 = arith.constant 1 : index
    %c2_35 = arith.constant 2 : index
    %16 = vector.load %arg3[%c0_33, %c1_34, %c2_35] : memref<4x3x3xf32, #tpu.memory_space<vmem>>, vector<4x1x1xf32>
    %c0_36 = arith.constant 0 : index
    %c2_37 = arith.constant 2 : index
    %c0_38 = arith.constant 0 : index
    %17 = vector.load %arg3[%c0_36, %c2_37, %c0_38] : memref<4x3x3xf32, #tpu.memory_space<vmem>>, vector<4x1x1xf32>
    %c0_39 = arith.constant 0 : index
    %c2_40 = arith.constant 2 : index
    %c1_41 = arith.constant 1 : index
    %18 = vector.load %arg3[%c0_39, %c2_40, %c1_41] : memref<4x3x3xf32, #tpu.memory_space<vmem>>, vector<4x1x1xf32>
    %c0_42 = arith.constant 0 : index
    %c2_43 = arith.constant 2 : index
    %c2_44 = arith.constant 2 : index
    %19 = vector.load %arg3[%c0_42, %c2_43, %c2_44] : memref<4x3x3xf32, #tpu.memory_space<vmem>>, vector<4x1x1xf32>
    %c0_45 = arith.constant 0 : index
    %c0_46 = arith.constant 0 : index
    %c0_47 = arith.constant 0 : index
    %20 = vector.load %arg4[%c0_45, %c0_46, %c0_47] : memref<4x3x3xf32, #tpu.memory_space<vmem>>, vector<4x1x1xf32>
    %c0_48 = arith.constant 0 : index
    %c0_49 = arith.constant 0 : index
    %c1_50 = arith.constant 1 : index
    %21 = vector.load %arg4[%c0_48, %c0_49, %c1_50] : memref<4x3x3xf32, #tpu.memory_space<vmem>>, vector<4x1x1xf32>
    %c0_51 = arith.constant 0 : index
    %c0_52 = arith.constant 0 : index
    %c2_53 = arith.constant 2 : index
    %22 = vector.load %arg4[%c0_51, %c0_52, %c2_53] : memref<4x3x3xf32, #tpu.memory_space<vmem>>, vector<4x1x1xf32>
    %c0_54 = arith.constant 0 : index
    %c1_55 = arith.constant 1 : index
    %c0_56 = arith.constant 0 : index
    %23 = vector.load %arg4[%c0_54, %c1_55, %c0_56] : memref<4x3x3xf32, #tpu.memory_space<vmem>>, vector<4x1x1xf32>
    %c0_57 = arith.constant 0 : index
    %c1_58 = arith.constant 1 : index
    %c1_59 = arith.constant 1 : index
    %24 = vector.load %arg4[%c0_57, %c1_58, %c1_59] : memref<4x3x3xf32, #tpu.memory_space<vmem>>, vector<4x1x1xf32>
    %c0_60 = arith.constant 0 : index
    %c1_61 = arith.constant 1 : index
    %c2_62 = arith.constant 2 : index
    %25 = vector.load %arg4[%c0_60, %c1_61, %c2_62] : memref<4x3x3xf32, #tpu.memory_space<vmem>>, vector<4x1x1xf32>
    %c0_63 = arith.constant 0 : index
    %c2_64 = arith.constant 2 : index
    %c0_65 = arith.constant 0 : index
    %26 = vector.load %arg4[%c0_63, %c2_64, %c0_65] : memref<4x3x3xf32, #tpu.memory_space<vmem>>, vector<4x1x1xf32>
    %c0_66 = arith.constant 0 : index
    %c2_67 = arith.constant 2 : index
    %c1_68 = arith.constant 1 : index
    %27 = vector.load %arg4[%c0_66, %c2_67, %c1_68] : memref<4x3x3xf32, #tpu.memory_space<vmem>>, vector<4x1x1xf32>
    %c0_69 = arith.constant 0 : index
    %c2_70 = arith.constant 2 : index
    %c2_71 = arith.constant 2 : index
    %28 = vector.load %arg4[%c0_69, %c2_70, %c2_71] : memref<4x3x3xf32, #tpu.memory_space<vmem>>, vector<4x1x1xf32>
    %c0_72 = arith.constant 0 : index
    %c0_73 = arith.constant 0 : index
    %c0_74 = arith.constant 0 : index
    %29 = vector.load %arg5[%c0_72, %c0_73, %c0_74] : memref<4x1x1xf32, #tpu.memory_space<vmem>>, vector<4x1x1xf32>
    %c0_75 = arith.constant 0 : index
    %c0_76 = arith.constant 0 : index
    %c0_77 = arith.constant 0 : index
    %30 = vector.load %arg6[%c0_75, %c0_76, %c0_77] : memref<4x1x1xf32, #tpu.memory_space<vmem>>, vector<4x1x1xf32>
    %c0_i32 = arith.constant 0 : i32
    %c16_i32 = arith.constant 16 : i32
    %31 = arith.muli %c0_i32, %c16_i32 : i32
    %32 = tpu.assume_multiple %31, 16 : i32
    %33 = vector.shape_cast %29 : vector<4x1x1xf32> to vector<4x1x1xf32>
    %34 = vector.broadcast %33 : vector<4x1x1xf32> to vector<4x16x16xf32>
    %35 = vector.shape_cast %30 : vector<4x1x1xf32> to vector<4x1x1xf32>
    %36 = vector.broadcast %35 : vector<4x1x1xf32> to vector<4x16x16xf32>
    %c0_i32_78 = arith.constant 0 : i32
    %37 = arith.addi %32, %c0_i32_78 : i32
    %c0_79 = arith.constant 0 : index
    %38 = arith.index_cast %37 : i32 to index
    %c0_80 = arith.constant 0 : index
    %39 = vector.load %arg8[%c0_79, %38, %c0_80] : memref<4x18x18xf32, #tpu.memory_space<vmem>>, vector<4x16x16xf32>
    %40 = vector.broadcast %11 : vector<4x1x1xf32> to vector<4x16x16xf32>
    %41 = arith.mulf %39, %40 : vector<4x16x16xf32>
    %42 = arith.addf %34, %41 : vector<4x16x16xf32>
    %43 = vector.broadcast %20 : vector<4x1x1xf32> to vector<4x16x16xf32>
    %44 = arith.mulf %39, %43 : vector<4x16x16xf32>
    %45 = arith.addf %36, %44 : vector<4x16x16xf32>
    %c0_i32_81 = arith.constant 0 : i32
    %46 = arith.addi %32, %c0_i32_81 : i32
    %c0_82 = arith.constant 0 : index
    %47 = arith.index_cast %46 : i32 to index
    %c1_83 = arith.constant 1 : index
    %48 = vector.load %arg8[%c0_82, %47, %c1_83] : memref<4x18x18xf32, #tpu.memory_space<vmem>>, vector<4x16x16xf32>
    %49 = vector.broadcast %12 : vector<4x1x1xf32> to vector<4x16x16xf32>
    %50 = arith.mulf %48, %49 : vector<4x16x16xf32>
    %51 = arith.addf %42, %50 : vector<4x16x16xf32>
    %52 = vector.broadcast %21 : vector<4x1x1xf32> to vector<4x16x16xf32>
    %53 = arith.mulf %48, %52 : vector<4x16x16xf32>
    %54 = arith.addf %45, %53 : vector<4x16x16xf32>
    %c0_i32_84 = arith.constant 0 : i32
    %55 = arith.addi %32, %c0_i32_84 : i32
    %c0_85 = arith.constant 0 : index
    %56 = arith.index_cast %55 : i32 to index
    %c2_86 = arith.constant 2 : index
    %57 = vector.load %arg8[%c0_85, %56, %c2_86] : memref<4x18x18xf32, #tpu.memory_space<vmem>>, vector<4x16x16xf32>
    %58 = vector.broadcast %13 : vector<4x1x1xf32> to vector<4x16x16xf32>
    %59 = arith.mulf %57, %58 : vector<4x16x16xf32>
    %60 = arith.addf %51, %59 : vector<4x16x16xf32>
    %61 = vector.broadcast %22 : vector<4x1x1xf32> to vector<4x16x16xf32>
    %62 = arith.mulf %57, %61 : vector<4x16x16xf32>
    %63 = arith.addf %54, %62 : vector<4x16x16xf32>
    %c1_i32 = arith.constant 1 : i32
    %64 = arith.addi %32, %c1_i32 : i32
    %c0_87 = arith.constant 0 : index
    %65 = arith.index_cast %64 : i32 to index
    %c0_88 = arith.constant 0 : index
    %66 = vector.load %arg8[%c0_87, %65, %c0_88] : memref<4x18x18xf32, #tpu.memory_space<vmem>>, vector<4x16x16xf32>
    %67 = vector.broadcast %14 : vector<4x1x1xf32> to vector<4x16x16xf32>
    %68 = arith.mulf %66, %67 : vector<4x16x16xf32>
    %69 = arith.addf %60, %68 : vector<4x16x16xf32>
    %70 = vector.broadcast %23 : vector<4x1x1xf32> to vector<4x16x16xf32>
    %71 = arith.mulf %66, %70 : vector<4x16x16xf32>
    %72 = arith.addf %63, %71 : vector<4x16x16xf32>
    %c1_i32_89 = arith.constant 1 : i32
    %73 = arith.addi %32, %c1_i32_89 : i32
    %c0_90 = arith.constant 0 : index
    %74 = arith.index_cast %73 : i32 to index
    %c1_91 = arith.constant 1 : index
    %75 = vector.load %arg8[%c0_90, %74, %c1_91] : memref<4x18x18xf32, #tpu.memory_space<vmem>>, vector<4x16x16xf32>
    %76 = vector.broadcast %15 : vector<4x1x1xf32> to vector<4x16x16xf32>
    %77 = arith.mulf %75, %76 : vector<4x16x16xf32>
    %78 = arith.addf %69, %77 : vector<4x16x16xf32>
    %79 = vector.broadcast %24 : vector<4x1x1xf32> to vector<4x16x16xf32>
    %80 = arith.mulf %75, %79 : vector<4x16x16xf32>
    %81 = arith.addf %72, %80 : vector<4x16x16xf32>
    %c1_i32_92 = arith.constant 1 : i32
    %82 = arith.addi %32, %c1_i32_92 : i32
    %c0_93 = arith.constant 0 : index
    %83 = arith.index_cast %82 : i32 to index
    %c2_94 = arith.constant 2 : index
    %84 = vector.load %arg8[%c0_93, %83, %c2_94] : memref<4x18x18xf32, #tpu.memory_space<vmem>>, vector<4x16x16xf32>
    %85 = vector.broadcast %16 : vector<4x1x1xf32> to vector<4x16x16xf32>
    %86 = arith.mulf %84, %85 : vector<4x16x16xf32>
    %87 = arith.addf %78, %86 : vector<4x16x16xf32>
    %88 = vector.broadcast %25 : vector<4x1x1xf32> to vector<4x16x16xf32>
    %89 = arith.mulf %84, %88 : vector<4x16x16xf32>
    %90 = arith.addf %81, %89 : vector<4x16x16xf32>
    %c2_i32 = arith.constant 2 : i32
    %91 = arith.addi %32, %c2_i32 : i32
    %c0_95 = arith.constant 0 : index
    %92 = arith.index_cast %91 : i32 to index
    %c0_96 = arith.constant 0 : index
    %93 = vector.load %arg8[%c0_95, %92, %c0_96] : memref<4x18x18xf32, #tpu.memory_space<vmem>>, vector<4x16x16xf32>
    %94 = vector.broadcast %17 : vector<4x1x1xf32> to vector<4x16x16xf32>
    %95 = arith.mulf %93, %94 : vector<4x16x16xf32>
    %96 = arith.addf %87, %95 : vector<4x16x16xf32>
    %97 = vector.broadcast %26 : vector<4x1x1xf32> to vector<4x16x16xf32>
    %98 = arith.mulf %93, %97 : vector<4x16x16xf32>
    %99 = arith.addf %90, %98 : vector<4x16x16xf32>
    %c2_i32_97 = arith.constant 2 : i32
    %100 = arith.addi %32, %c2_i32_97 : i32
    %c0_98 = arith.constant 0 : index
    %101 = arith.index_cast %100 : i32 to index
    %c1_99 = arith.constant 1 : index
    %102 = vector.load %arg8[%c0_98, %101, %c1_99] : memref<4x18x18xf32, #tpu.memory_space<vmem>>, vector<4x16x16xf32>
    %103 = vector.broadcast %18 : vector<4x1x1xf32> to vector<4x16x16xf32>
    %104 = arith.mulf %102, %103 : vector<4x16x16xf32>
    %105 = arith.addf %96, %104 : vector<4x16x16xf32>
    %106 = vector.broadcast %27 : vector<4x1x1xf32> to vector<4x16x16xf32>
    %107 = arith.mulf %102, %106 : vector<4x16x16xf32>
    %108 = arith.addf %99, %107 : vector<4x16x16xf32>
    %c2_i32_100 = arith.constant 2 : i32
    %109 = arith.addi %32, %c2_i32_100 : i32
    %c0_101 = arith.constant 0 : index
    %110 = arith.index_cast %109 : i32 to index
    %c2_102 = arith.constant 2 : index
    %111 = vector.load %arg8[%c0_101, %110, %c2_102] : memref<4x18x18xf32, #tpu.memory_space<vmem>>, vector<4x16x16xf32>
    %112 = vector.broadcast %19 : vector<4x1x1xf32> to vector<4x16x16xf32>
    %113 = arith.mulf %111, %112 : vector<4x16x16xf32>
    %114 = arith.addf %105, %113 : vector<4x16x16xf32>
    %115 = vector.broadcast %28 : vector<4x1x1xf32> to vector<4x16x16xf32>
    %116 = arith.mulf %111, %115 : vector<4x16x16xf32>
    %117 = arith.addf %108, %116 : vector<4x16x16xf32>
    %cst_103 = arith.constant 5.000000e-01 : f32
    %118 = vector.broadcast %cst_103 : f32 to vector<4x16x16xf32>
    %119 = arith.mulf %118, %114 : vector<4x16x16xf32>
    %120 = math.tanh %119 : vector<4x16x16xf32>
    %cst_104 = arith.constant 5.000000e-01 : f32
    %121 = vector.broadcast %cst_104 : f32 to vector<4x16x16xf32>
    %122 = arith.mulf %121, %120 : vector<4x16x16xf32>
    %cst_105 = arith.constant 5.000000e-01 : f32
    %123 = vector.broadcast %cst_105 : f32 to vector<4x16x16xf32>
    %124 = arith.addf %122, %123 : vector<4x16x16xf32>
    %125 = arith.mulf %124, %75 : vector<4x16x16xf32>
    %126 = arith.addf %125, %117 : vector<4x16x16xf32>
    %c0_106 = arith.constant 0 : index
    %c0_107 = arith.constant 0 : index
    %127 = arith.index_cast %32 : i32 to index
    %c0_108 = arith.constant 0 : index
    %128 = vector.load %arg7[%c0_106, %c0_107, %127, %c0_108] : memref<1x4x16x16xf32, #tpu.memory_space<vmem>>, vector<1x4x16x16xf32>
    %129 = vector.shape_cast %128 : vector<1x4x16x16xf32> to vector<4x16x16xf32>
    %130 = vector.shape_cast %126 : vector<4x16x16xf32> to vector<1x4x16x16xf32>
    tpu.vector_store %arg7[%c0_106, %c0_107, %127, %c0_108], %130 {strides = array<i32>} : memref<1x4x16x16xf32, #tpu.memory_space<vmem>>, vector<1x4x16x16xf32>,
    %c1_i32_109 = arith.constant 1 : i32
    return
  }
  func.func @transform_0(%arg0: i32, %arg1: i32) -> (i32, i32, i32, i32) {
    %c0_i32 = arith.constant 0 : i32
    %c0_i32_0 = arith.constant 0 : i32
    %c0_i32_1 = arith.constant 0 : i32
    return %arg1, %arg0, %c0_i32, %c0_i32_0 : i32, i32, i32, i32
  }
  func.func @transform_1(%arg0: i32, %arg1: i32) -> (i32, i32, i32) {
    %c0_i32 = arith.constant 0 : i32
    %c0_i32_0 = arith.constant 0 : i32
    %c0_i32_1 = arith.constant 0 : i32
    return %arg0, %c0_i32, %c0_i32_0 : i32, i32, i32
  }
  func.func @transform_2(%arg0: i32, %arg1: i32) -> (i32, i32, i32) {
    %c0_i32 = arith.constant 0 : i32
    %c0_i32_0 = arith.constant 0 : i32
    %c0_i32_1 = arith.constant 0 : i32
    return %arg0, %c0_i32, %c0_i32_0 : i32, i32, i32
  }
  func.func @transform_3(%arg0: i32, %arg1: i32) -> (i32, i32, i32) {
    %c0_i32 = arith.constant 0 : i32
    %c0_i32_0 = arith.constant 0 : i32
    %c0_i32_1 = arith.constant 0 : i32
    return %arg0, %c0_i32, %c0_i32_0 : i32, i32, i32
  }
  func.func @transform_4(%arg0: i32, %arg1: i32) -> (i32, i32, i32) {
    %c0_i32 = arith.constant 0 : i32
    %c0_i32_0 = arith.constant 0 : i32
    %c0_i32_1 = arith.constant 0 : i32
    return %arg0, %c0_i32, %c0_i32_0 : i32, i32, i32
  }
  func.func @transform_5(%arg0: i32, %arg1: i32) -> (i32, i32, i32, i32) {
    %c0_i32 = arith.constant 0 : i32
    %c0_i32_0 = arith.constant 0 : i32
    %c0_i32_1 = arith.constant 0 : i32
    return %arg1, %arg0, %c0_i32, %c0_i32_0 : i32, i32, i32, i32
  }
}

</mosaic_0001>

<llo_original>
// kernel: tpu_custom_call.1
$region0: #{tpu_custom_call.1}
  #allocation0 [shape = 'u32[]', space=smem, size = 0x4, offset = 0x4, fixed_abs, tag = 'smem constant byte address 0x4 - core index']
  #allocation1 [shape = 'u32[144,128]{1,0:T(1,128)}', space=vmem, size = 0x12000, scoped, tag = 'internal scratch']
  #allocation2 [shape = 'f32[4,18,18]{2,1,0:T(8,128)}', space=vmem, size = 0xc000, scoped, tag = 'scratch operand']
  %s0 = inlined_call_operand.hbm [shape: f32[2,4,16,16], index: 0, kind: input, shape index: {}]
  %s1 = inlined_call_operand.vmem [shape: f32[4,3,3], index: 1, kind: input, shape index: {}]
  %s2 = inlined_call_operand.vmem [shape: f32[4,3,3], index: 2, kind: input, shape index: {}]
  %s3 = inlined_call_operand.vmem [shape: f32[4,1,1], index: 3, kind: input, shape index: {}]
  %s4 = inlined_call_operand.vmem [shape: f32[4,1,1], index: 4, kind: input, shape index: {}]
  %s5 = inlined_call_operand.hbm [shape: f32[2,4,16,16], index: 5, kind: output, shape index: {}]
  %s6 = sld [smem:[#allocation0]]
  $region57: #{tpu_custom_call.1} parent=0
    _
  %s8 = ssub.s32 1, %s6
  %s9 = scalar_select 0, %s8, %s6
  $region1: #{tpu_custom_call.1} parent=0
    #allocation3 [shape = 'u8[65536]{0}', space=vmem, size = 0x10000, scoped, tag = 'input window, operand 0']
    #allocation4 [shape = 's32[2]{0}', space=sflag, size = 0x8, scoped, tag = 'scoped memory for tpu_custom_call.1']
    #allocation5 [shape = 's32[2]{0}', space=sflag, size = 0x8, scoped, tag = 'scoped memory for tpu_custom_call.1']
    #allocation6 [shape = 'u8[65536]{0}', space=vmem, size = 0x10000, scoped, tag = 'output window, operand 0']
    %10 = vsyncpa [#allocation4], 0
    %s11 = scalar_lea.sflag [#allocation4], 1
    %12 = vsyncpa %s11, 0
    %13 = vsyncpa [#allocation5], 0
    %s14 = scalar_lea.sflag [#allocation5], 1
    %15 = vsyncpa %s14, 0
    loop: start=0, step=1, limit=4
    $region2: #{tpu_custom_call.1} parent=1 // loop_pre_header
      _
    $region3: #{tpu_custom_call.1} parent=1 // loop_header
      %s17 = sphi 0, %s21
      %p18 = scmp.ge.s32.totalorder %s17, 4
      %s24 = sphi 0, %s36
      %s25 = sphi 0, %s32
      %s26 = sphi 0, %s24
      %s27 = sphi 0, %s25
      %s28 = sphi 0, %s26
      %s29 = sphi 0, %s27
      %s41 = sphi 0, %s43
      %s44 = sphi 0, %s41
      %s45 = sphi 0, %s44
      %s61 = sphi 0, %s45
      %s67 = sphi 0, %s69
      %s70 = sphi 0, %s67
      %s71 = sphi 0, %s70
      %s87 = sphi 0, %s71
      %s93 = sphi 0, %s95
      %s96 = sphi 0, %s93
      %s97 = sphi 0, %s96
      %s113 = sphi 0, %s97
      %s119 = sphi 0, %s121
      %s122 = sphi 0, %s119
      %s123 = sphi 0, %s122
      %s139 = sphi 0, %s123
      %s145 = sphi 0, %s147
      %s148 = sphi 0, %s145
      %s149 = sphi 0, %s148
      %s165 = sphi 0, %s149
      %s173 = sphi 0, %s175
      %s176 = sphi 0, %s173
      %s177 = sphi 0, %s176
      %s193 = sphi 0, %s177
    $region4: #{tpu_custom_call.1} parent=1 // loop_header_branch
      %20 = sbr.rel (%p18) target = $region8
    $region5: #{tpu_custom_call.1} parent=1 // loop_body
      %s22 = ssub.s32 %s17, 1
      %s23 = ssub.s32 %s17, 2
      %s30 = sadd.s32 1, %s25
      %p31 = scmp.ge.s32.totalorder %s30, 2
      %s32 = scalar_select %p31, 0, %s30
      %s33 = sadd.s32 1, %s24
      %s34 = scalar_select %p31, %s33, %s24
      %p35 = scmp.ge.s32.totalorder %s34, 1
      %s36 = scalar_select %p35, 0, %s34
      %s37 = ssub.s32 %s25, %s32
      %s38 = ssub.s32 %s24, %s36
      %s39 = sor.u32 %s37, %s38
      %p40 = scmp.eq.s32.totalorder %s39, 0
      %s42 = sadd.s32 %s41, 1
      %s43 = scalar_select %p40, %s41, %s42
      %p46 = pneg %p40
      %p47 = scmp.eq.s32.totalorder %s17, 1
      %p48 = por %p46, %p47
      %p49 = scmp.ne.s32.totalorder %s41, %s44
      %p50 = scmp.eq.s32.totalorder %s17, 0
      %p51 = por %p49, %p50
      %p52 = scmp.ne.s32.totalorder %s41, %s44
      %p53 = scmp.eq.s32.totalorder %s22, 1
      %p54 = por %p52, %p53
      %p55 = scmp.ne.s32.totalorder %s44, %s45
      %p56 = scmp.eq.s32.totalorder %s22, 0
      %p57 = por %p55, %p56
      %p58 = scmp.ne.s32.totalorder %s44, %s45
      %p59 = scmp.eq.s32.totalorder %s23, 1
      %p60 = por %p58, %p59
      %p62 = scmp.ne.s32.totalorder %s45, %s61
      %p63 = scmp.eq.s32.totalorder %s23, 0
      %p64 = por %p62, %p63
      %s65 = ssub.s32 %s24, %s36
      %p66 = scmp.eq.s32.totalorder %s65, 0
      %s68 = sadd.s32 %s67, 1
      %s69 = scalar_select %p66, %s67, %s68
      %p72 = pneg %p66
      %p73 = scmp.eq.s32.totalorder %s17, 1
      %p74 = por %p72, %p73
      %p75 = scmp.ne.s32.totalorder %s67, %s70
      %p76 = scmp.eq.s32.totalorder %s17, 0
      %p77 = por %p75, %p76
      %p78 = scmp.ne.s32.totalorder %s67, %s70
      %p79 = scmp.eq.s32.totalorder %s22, 1
      %p80 = por %p78, %p79
      %p81 = scmp.ne.s32.totalorder %s70, %s71
      %p82 = scmp.eq.s32.totalorder %s22, 0
      %p83 = por %p81, %p82
      %p84 = scmp.ne.s32.totalorder %s70, %s71
      %p85 = scmp.eq.s32.totalorder %s23, 1
      %p86 = por %p84, %p85
      %p88 = scmp.ne.s32.totalorder %s71, %s87
      %p89 = scmp.eq.s32.totalorder %s23, 0
      %p90 = por %p88, %p89
      %s91 = ssub.s32 %s24, %s36
      %p92 = scmp.eq.s32.totalorder %s91, 0
      %s94 = sadd.s32 %s93, 1
      %s95 = scalar_select %p92, %s93, %s94
      %p98 = pneg %p92
      %p99 = scmp.eq.s32.totalorder %s17, 1
      %p100 = por %p98, %p99
      %p101 = scmp.ne.s32.totalorder %s93, %s96
      %p102 = scmp.eq.s32.totalorder %s17, 0
      %p103 = por %p101, %p102
      %p104 = scmp.ne.s32.totalorder %s93, %s96
      %p105 = scmp.eq.s32.totalorder %s22, 1
      %p106 = por %p104, %p105
      %p107 = scmp.ne.s32.totalorder %s96, %s97
      %p108 = scmp.eq.s32.totalorder %s22, 0
      %p109 = por %p107, %p108
      %p110 = scmp.ne.s32.totalorder %s96, %s97
      %p111 = scmp.eq.s32.totalorder %s23, 1
      %p112 = por %p110, %p111
      %p114 = scmp.ne.s32.totalorder %s97, %s113
      %p115 = scmp.eq.s32.totalorder %s23, 0
      %p116 = por %p114, %p115
      %s117 = ssub.s32 %s24, %s36
      %p118 = scmp.eq.s32.totalorder %s117, 0
      %s120 = sadd.s32 %s119, 1
      %s121 = scalar_select %p118, %s119, %s120
      %p124 = pneg %p118
      %p125 = scmp.eq.s32.totalorder %s17, 1
      %p126 = por %p124, %p125
      %p127 = scmp.ne.s32.totalorder %s119, %s122
      %p128 = scmp.eq.s32.totalorder %s17, 0
      %p129 = por %p127, %p128
      %p130 = scmp.ne.s32.totalorder %s119, %s122
      %p131 = scmp.eq.s32.totalorder %s22, 1
      %p132 = por %p130, %p131
      %p133 = scmp.ne.s32.totalorder %s122, %s123
      %p134 = scmp.eq.s32.totalorder %s22, 0
      %p135 = por %p133, %p134
      %p136 = scmp.ne.s32.totalorder %s122, %s123
      %p137 = scmp.eq.s32.totalorder %s23, 1
      %p138 = por %p136, %p137
      %p140 = scmp.ne.s32.totalorder %s123, %s139
      %p141 = scmp.eq.s32.totalorder %s23, 0
      %p142 = por %p140, %p141
      %s143 = ssub.s32 %s24, %s36
      %p144 = scmp.eq.s32.totalorder %s143, 0
      %s146 = sadd.s32 %s145, 1
      %s147 = scalar_select %p144, %s145, %s146
      %p150 = pneg %p144
      %p151 = scmp.eq.s32.totalorder %s17, 1
      %p152 = por %p150, %p151
      %p153 = scmp.ne.s32.totalorder %s145, %s148
      %p154 = scmp.eq.s32.totalorder %s17, 0
      %p155 = por %p153, %p154
      %p156 = scmp.ne.s32.totalorder %s145, %s148
      %p157 = scmp.eq.s32.totalorder %s22, 1
      %p158 = por %p156, %p157
      %p159 = scmp.ne.s32.totalorder %s148, %s149
      %p160 = scmp.eq.s32.totalorder %s22, 0
      %p161 = por %p159, %p160
      %p162 = scmp.ne.s32.totalorder %s148, %s149
      %p163 = scmp.eq.s32.totalorder %s23, 1
      %p164 = por %p162, %p163
      %p166 = scmp.ne.s32.totalorder %s149, %s165
      %p167 = scmp.eq.s32.totalorder %s23, 0
      %p168 = por %p166, %p167
      %s169 = ssub.s32 %s25, %s32
      %s170 = ssub.s32 %s24, %s36
      %s171 = sor.u32 %s169, %s170
      %p172 = scmp.eq.s32.totalorder %s171, 0
      %s174 = sadd.s32 %s173, 1
      %s175 = scalar_select %p172, %s173, %s174
      %p178 = pneg %p172
      %p179 = scmp.eq.s32.totalorder %s17, 1
      %p180 = por %p178, %p179
      %p181 = scmp.ne.s32.totalorder %s173, %s176
      %p182 = scmp.eq.s32.totalorder %s17, 0
      %p183 = por %p181, %p182
      %p184 = scmp.ne.s32.totalorder %s173, %s176
      %p185 = scmp.eq.s32.totalorder %s22, 1
      %p186 = por %p184, %p185
      %p187 = scmp.ne.s32.totalorder %s176, %s177
      %p188 = scmp.eq.s32.totalorder %s22, 0
      %p189 = por %p187, %p188
      %p190 = scmp.ne.s32.totalorder %s176, %s177
      %p191 = scmp.eq.s32.totalorder %s23, 1
      %p192 = por %p190, %p191
      %p194 = scmp.ne.s32.totalorder %s177, %s193
      %p195 = scmp.eq.s32.totalorder %s23, 0
      %p196 = por %p194, %p195
      %p197 = scmp.le.s32.totalorder 1, %s17
      %p198 = scmp.lt.s32.totalorder %s17, 3
      %p199 = pnand %p197, %p198
      %p200 = pneg %p199
      // Predicated region
      $region9: #{tpu_custom_call.1} parent=5 // pred_check
        _
      $region10: #{tpu_custom_call.1} parent=5 // pred_check_branch
        %202 = sbr.rel (%p199) target = $region12
      $region11: #{tpu_custom_call.1} parent=5 // pred_region
        %s203 = ssub.s32 %s17, 1
        // Predicated region
        $region13: #{tpu_custom_call.1} parent=11 // pred_check
          %p204 = pneg %p83
        $region14: #{tpu_custom_call.1} parent=11 // pred_check_branch
          %206 = sbr.rel (%p204) target = $region16
        $region15: #{tpu_custom_call.1} parent=11 // pred_region
          %s207 = smul.u32 4, %s26
          %p208 = scmp.lt.s32.totalorder %s207, 3
          %s209 = scalar_select %p208, %s207, 3
          %s210 = smul.addr %s209, 4
          %s211 = scalar_lea.vmem %s1, %s210
          %s212 = smul.u32 4, %s26
        $region16: #{tpu_custom_call.1} parent=11 // pred_fallthru
          _
        // Predicated region
        $region17: #{tpu_custom_call.1} parent=11 // pred_check
          %p213 = pneg %p109
        $region18: #{tpu_custom_call.1} parent=11 // pred_check_branch
          %215 = sbr.rel (%p213) target = $region20
        $region19: #{tpu_custom_call.1} parent=11 // pred_region
          %s216 = smul.u32 4, %s26
          %p217 = scmp.lt.s32.totalorder %s216, 3
          %s218 = scalar_select %p217, %s216, 3
          %s219 = smul.addr %s218, 4
          %s220 = scalar_lea.vmem %s2, %s219
          %s221 = smul.u32 4, %s26
        $region20: #{tpu_custom_call.1} parent=11 // pred_fallthru
          _
        // Predicated region
        $region21: #{tpu_custom_call.1} parent=11 // pred_check
          %p222 = pneg %p135
        $region22: #{tpu_custom_call.1} parent=11 // pred_check_branch
          %224 = sbr.rel (%p222) target = $region24
        $region23: #{tpu_custom_call.1} parent=11 // pred_region
          %s225 = smul.u32 4, %s26
          %p226 = scmp.lt.s32.totalorder %s225, 3
          %s227 = scalar_select %p226, %s225, 3
          %s228 = scalar_lea.vmem %s3, %s227
          %s229 = smul.u32 4, %s26
        $region24: #{tpu_custom_call.1} parent=11 // pred_fallthru
          _
        // Predicated region
        $region25: #{tpu_custom_call.1} parent=11 // pred_check
          %p230 = pneg %p161
        $region26: #{tpu_custom_call.1} parent=11 // pred_check_branch
          %232 = sbr.rel (%p230) target = $region28
        $region27: #{tpu_custom_call.1} parent=11 // pred_region
          %s233 = smul.u32 4, %s26
          %p234 = scmp.lt.s32.totalorder %s233, 3
          %s235 = scalar_select %p234, %s233, 3
          %s236 = scalar_lea.vmem %s4, %s235
          %s237 = smul.u32 4, %s26
        $region28: #{tpu_custom_call.1} parent=11 // pred_fallthru
          _
      $region12: #{tpu_custom_call.1} parent=5 // pred_fallthru
        _
      %p238 = scmp.lt.s32.totalorder %s17, 2
      // Predicated region
      $region29: #{tpu_custom_call.1} parent=5 // pred_check
        %p239 = pneg %p238
      $region30: #{tpu_custom_call.1} parent=5 // pred_check_branch
        %241 = sbr.rel (%p239) target = $region32
      $region31: #{tpu_custom_call.1} parent=5 // pred_region
        // Predicated region
        $region33: #{tpu_custom_call.1} parent=31 // pred_check
          %p242 = pneg %p51
        $region34: #{tpu_custom_call.1} parent=31 // pred_check_branch
          %244 = sbr.rel (%p242) target = $region36
        $region35: #{tpu_custom_call.1} parent=31 // pred_region
          %s245 = sand.u32 %s41, 1
          %s246 = scalar_lea.sflag [#allocation4], %s245
          %s247 = sand.u32 %s41, 1
          %s248 = smul.addr %s247, 64
          %s249 = scalar_lea.vmem [#allocation3], %s248
          %s250 = smul.u32 4, %s24
          %s252 = ssub.s32 1024, 1024
          %253 = vsyncadd %s246, %s252
          %s254 = smul.addr %s250, 2
          %s255 = smul.addr %s25, 8
          %s256 = sadd.s32 %s254, %s255
          %s257 = smul.addr %s256, 128
          %s258 = scalar_lea.hbm %s0, %s257
          %s259 = sshll.u32 %s249, 4
          %s260 = int_to_ptr.vmem [resolvable:$true] %s259
          %265 = dma.hbm_to_vmem [thread:$0]  %s258, 1024, %s260, %s246, 128, 128, 8
        $region36: #{tpu_custom_call.1} parent=31 // pred_fallthru
          _
      $region32: #{tpu_custom_call.1} parent=5 // pred_fallthru
        _
      %p266 = scmp.le.s32.totalorder 1, %s17
      %p267 = scmp.lt.s32.totalorder %s17, 3
      %p268 = pnand %p266, %p267
      %p269 = pneg %p268
      // Predicated region
      $region37: #{tpu_custom_call.1} parent=5 // pred_check
        _
      $region38: #{tpu_custom_call.1} parent=5 // pred_check_branch
        %271 = sbr.rel (%p268) target = $region40
      $region39: #{tpu_custom_call.1} parent=5 // pred_region
        %s272 = ssub.s32 %s17, 1
        %s273 = sand.u32 %s44, 1
        %s274 = scalar_lea.sflag [#allocation4], %s273
        %s275 = sand.u32 %s44, 1
        %s276 = smul.addr %s275, 64
        %s277 = scalar_lea.vmem [#allocation3], %s276
        // Predicated region
        $region41: #{tpu_custom_call.1} parent=39 // pred_check
          %p278 = pneg %p57
        $region42: #{tpu_custom_call.1} parent=39 // pred_check_branch
          %280 = sbr.rel (%p278) target = $region44
        $region43: #{tpu_custom_call.1} parent=39 // pred_region
          %281 = dma.done %s274, 1024
        $region44: #{tpu_custom_call.1} parent=39 // pred_fallthru
          _
        %s282 = sand.u32 %s44, 1
        %s283 = scalar_lea.sflag [#allocation4], %s282
        %s284 = sand.u32 %s44, 1
        %s285 = smul.addr %s284, 64
        %s286 = scalar_lea.vmem [#allocation3], %s285
        %p287 = pneg %p57
        %p288 = pneg %p54
        %s289 = smul.u32 4, %s26
        %p290 = scmp.lt.s32.totalorder %s289, 3
        %s291 = scalar_select %p290, %s289, 3
        %s292 = smul.addr %s291, 4
        %s293 = scalar_lea.vmem %s1, %s292
        %p294 = pneg %p83
        %p295 = pneg %p80
        %s296 = smul.u32 4, %s26
        %p297 = scmp.lt.s32.totalorder %s296, 3
        %s298 = scalar_select %p297, %s296, 3
        %s299 = smul.addr %s298, 4
        %s300 = scalar_lea.vmem %s2, %s299
        %p301 = pneg %p109
        %p302 = pneg %p106
        %s303 = smul.u32 4, %s26
        %p304 = scmp.lt.s32.totalorder %s303, 3
        %s305 = scalar_select %p304, %s303, 3
        %s306 = scalar_lea.vmem %s3, %s305
        %p307 = pneg %p135
        %p308 = pneg %p132
        %s309 = smul.u32 4, %s26
        %p310 = scmp.lt.s32.totalorder %s309, 3
        %s311 = scalar_select %p310, %s309, 3
        %s312 = scalar_lea.vmem %s4, %s311
        %p313 = pneg %p161
        %p314 = pneg %p158
        %p315 = pneg %p189
        %p316 = pneg %p186
        %s317 = sand.u32 %s176, 1
        %s318 = scalar_lea.sflag [#allocation5], %s317
        %s319 = sand.u32 %s176, 1
        %s320 = smul.addr %s319, 64
        %s321 = scalar_lea.vmem [#allocation6], %s320
        %s322 = smul.u32 4, %s26
        %s323 = smul.u32 4, %s26
        %p324 = scmp.lt.s32.totalorder %s323, 3
        %s325 = scalar_select %p324, %s323, 3
        %s326 = smul.addr %s325, 4
        %s327 = scalar_lea.vmem %s1, %s326
        %s328 = smul.u32 4, %s26
        %s329 = smul.u32 4, %s26
        %p330 = scmp.lt.s32.totalorder %s329, 3
        %s331 = scalar_select %p330, %s329, 3
        %s332 = smul.addr %s331, 4
        %s333 = scalar_lea.vmem %s2, %s332
        %s334 = smul.u32 4, %s26
        %s335 = smul.u32 4, %s26
        %p336 = scmp.lt.s32.totalorder %s335, 3
        %s337 = scalar_select %p336, %s335, 3
        %s338 = scalar_lea.vmem %s3, %s337
        %s339 = smul.u32 4, %s26
        %s340 = smul.u32 4, %s26
        %p341 = scmp.lt.s32.totalorder %s340, 3
        %s342 = scalar_select %p341, %s340, 3
        %s343 = scalar_lea.vmem %s4, %s342
        %s344 = smul.u32 4, %s26
        %s345 = smul.u32 4, %s26
        %vm346 = vcmask 139264
        %347 = vst.msk [vmem:[#allocation2] sm:$0x1] %vm346, 0.0
        %348 = vst.msk [vmem:[#allocation2 + $0x18] sm:$0x1] %vm346, 0.0
        %349 = vst.msk [vmem:[#allocation2 + $0x30] sm:$0x1] %vm346, 0.0
        %350 = vst.msk [vmem:[#allocation2 + $0x48] sm:$0x1] %vm346, 0.0
        %351 = vst.msk [vmem:[#allocation2 + $0x11] sm:$0x1] %vm346, 0.0
        %352 = vst.msk [vmem:[#allocation2 + $0x29] sm:$0x1] %vm346, 0.0
        %353 = vst.msk [vmem:[#allocation2 + $0x41] sm:$0x1] %vm346, 0.0
        %354 = vst.msk [vmem:[#allocation2 + $0x59] sm:$0x1] %vm346, 0.0
        %vm355 = vcmask 7168
        %356 = vst.msk [vmem:[#allocation2 + $0x1] sm:$0xff] %vm355, 0.0
        %357 = vst.msk [vmem:[#allocation2 + $0x9] sm:$0xff] %vm355, 0.0
        %358 = vst.msk [vmem:[#allocation2 + $0x19] sm:$0xff] %vm355, 0.0
        %359 = vst.msk [vmem:[#allocation2 + $0x21] sm:$0xff] %vm355, 0.0
        %360 = vst.msk [vmem:[#allocation2 + $0x31] sm:$0xff] %vm355, 0.0
        %361 = vst.msk [vmem:[#allocation2 + $0x39] sm:$0xff] %vm355, 0.0
        %362 = vst.msk [vmem:[#allocation2 + $0x49] sm:$0xff] %vm355, 0.0
        %363 = vst.msk [vmem:[#allocation2 + $0x51] sm:$0xff] %vm355, 0.0
        %vm364 = vcmask 146568
        %365 = vst.msk [vmem:[#allocation2 + $0x1] sm:$0xff] %vm364, 0.0
        %366 = vst.msk [vmem:[#allocation2 + $0x9] sm:$0xff] %vm364, 0.0
        %367 = vst.msk [vmem:[#allocation2 + $0x19] sm:$0xff] %vm364, 0.0
        %368 = vst.msk [vmem:[#allocation2 + $0x21] sm:$0xff] %vm364, 0.0
        %369 = vst.msk [vmem:[#allocation2 + $0x31] sm:$0xff] %vm364, 0.0
        %370 = vst.msk [vmem:[#allocation2 + $0x39] sm:$0xff] %vm364, 0.0
        %371 = vst.msk [vmem:[#allocation2 + $0x49] sm:$0xff] %vm364, 0.0
        %372 = vst.msk [vmem:[#allocation2 + $0x51] sm:$0xff] %vm364, 0.0
        %v373 = vld [vmem:[%s277] sm:$0xff]
        %v374 = vld [vmem:[%s277 + $0x8] sm:$0xff]
        %v375 = vld [vmem:[%s277 + $0x10] sm:$0xff]
        %v376 = vld [vmem:[%s277 + $0x18] sm:$0xff]
        %v377 = vld [vmem:[%s277 + $0x20] sm:$0xff]
        %v378 = vld [vmem:[%s277 + $0x28] sm:$0xff]
        %v379 = vld [vmem:[%s277 + $0x30] sm:$0xff]
        %v380 = vld [vmem:[%s277 + $0x38] sm:$0xff]
        %389 = vrot.lane.b32.xlu0 %v373, 1
        %v390 = vpop.permute.xlu0 %389
        %391 = vrot.lane.b32.xlu0 %v374, 1
        %v392 = vpop.permute.xlu0 %391
        %393 = vrot.lane.b32.xlu0 %v375, 1
        %v394 = vpop.permute.xlu0 %393
        %395 = vrot.lane.b32.xlu0 %v376, 1
        %v396 = vpop.permute.xlu0 %395
        %397 = vrot.lane.b32.xlu0 %v377, 1
        %v398 = vpop.permute.xlu0 %397
        %399 = vrot.lane.b32.xlu0 %v378, 1
        %v400 = vpop.permute.xlu0 %399
        %401 = vrot.lane.b32.xlu0 %v379, 1
        %v402 = vpop.permute.xlu0 %401
        %403 = vrot.lane.b32.xlu0 %v380, 1
        %v404 = vpop.permute.xlu0 %403
        %vm413 = vcmask 138248
        %414 = vst.msk [vmem:[#allocation2 + $0x1] sm:$0xff] %vm413, %v390
        %415 = vst.msk [vmem:[#allocation2 + $0x9] sm:$0xff] %vm413, %v392
        %416 = vst.msk [vmem:[#allocation2 + $0x19] sm:$0xff] %vm413, %v394
        %417 = vst.msk [vmem:[#allocation2 + $0x21] sm:$0xff] %vm413, %v396
        %418 = vst.msk [vmem:[#allocation2 + $0x31] sm:$0xff] %vm413, %v398
        %419 = vst.msk [vmem:[#allocation2 + $0x39] sm:$0xff] %vm413, %v400
        %420 = vst.msk [vmem:[#allocation2 + $0x49] sm:$0xff] %vm413, %v402
        %421 = vst.msk [vmem:[#allocation2 + $0x51] sm:$0xff] %vm413, %v404
        %v422 = vld [vmem:[%s327] sm:$0x1]
        %v423 = vld [vmem:[%s327 + $0x4] sm:$0x1]
        %v424 = vld [vmem:[%s327 + $0x8] sm:$0x1]
        %v425 = vld [vmem:[%s327 + $0xc] sm:$0x1]
        %v426 = vld [vmem:[%s327 + $0x1] sm:$0x1]
        %v427 = vld [vmem:[%s327 + $0x5] sm:$0x1]
        %v428 = vld [vmem:[%s327 + $0x9] sm:$0x1]
        %v429 = vld [vmem:[%s327 + $0xd] sm:$0x1]
        %v430 = vld [vmem:[%s327 + $0x2] sm:$0x1]
        %v431 = vld [vmem:[%s327 + $0x6] sm:$0x1]
        %v432 = vld [vmem:[%s327 + $0xa] sm:$0x1]
        %v433 = vld [vmem:[%s327 + $0xe] sm:$0x1]
        %v434 = vld [vmem:[%s333] sm:$0x1]
        %v435 = vld [vmem:[%s333 + $0x4] sm:$0x1]
        %v436 = vld [vmem:[%s333 + $0x8] sm:$0x1]
        %v437 = vld [vmem:[%s333 + $0xc] sm:$0x1]
        %v438 = vld [vmem:[%s333 + $0x1] sm:$0x1]
        %v439 = vld [vmem:[%s333 + $0x5] sm:$0x1]
        %v440 = vld [vmem:[%s333 + $0x9] sm:$0x1]
        %v441 = vld [vmem:[%s333 + $0xd] sm:$0x1]
        %v442 = vld [vmem:[%s333 + $0x2] sm:$0x1]
        %v443 = vld [vmem:[%s333 + $0x6] sm:$0x1]
        %v444 = vld [vmem:[%s333 + $0xa] sm:$0x1]
        %v445 = vld [vmem:[%s333 + $0xe] sm:$0x1]
        %v446 = vld [vmem:[%s338] sm:$0x1]
        %v447 = vld [vmem:[%s338 + $0x1] sm:$0x1]
        %v448 = vld [vmem:[%s338 + $0x2] sm:$0x1]
        %v449 = vld [vmem:[%s338 + $0x3] sm:$0x1]
        %v450 = vld [vmem:[%s343] sm:$0x1]
        %v451 = vld [vmem:[%s343 + $0x1] sm:$0x1]
        %v452 = vld [vmem:[%s343 + $0x2] sm:$0x1]
        %v453 = vld [vmem:[%s343 + $0x3] sm:$0x1]
        %v458 = vlaneseq
        %v459 = vshrl.u32 %v458, 7
        %v460 = vsub.s32 0, %v459
        %v461 = vrot.slane %v446, %v460
        %v462 = vlaneseq
        %v463 = vshrl.u32 %v462, 7
        %v464 = vsub.s32 0, %v463
        %v465 = vrot.slane %v447, %v464
        %v466 = vlaneseq
        %v467 = vshrl.u32 %v466, 7
        %v468 = vsub.s32 0, %v467
        %v469 = vrot.slane %v448, %v468
        %v470 = vlaneseq
        %v471 = vshrl.u32 %v470, 7
        %v472 = vsub.s32 0, %v471
        %v473 = vrot.slane %v449, %v472
        %474 = vset.pattern.permute.xlu0 0
        %475 = vperm.xlu0 %474, %v461
        %v476 = vpop.permute.xlu0 %475
        %478 = vset.pattern.permute.xlu0 0
        %479 = vperm.xlu0 %478, %v465
        %v480 = vpop.permute.xlu0 %479
        %482 = vset.pattern.permute.xlu0 0
        %483 = vperm.xlu0 %482, %v469
        %v484 = vpop.permute.xlu0 %483
        %486 = vset.pattern.permute.xlu0 0
        %487 = vperm.xlu0 %486, %v473
        %v488 = vpop.permute.xlu0 %487
        %v494 = vlaneseq
        %v495 = vshrl.u32 %v494, 7
        %v496 = vsub.s32 0, %v495
        %v497 = vrot.slane %v450, %v496
        %v498 = vlaneseq
        %v499 = vshrl.u32 %v498, 7
        %v500 = vsub.s32 0, %v499
        %v501 = vrot.slane %v451, %v500
        %v502 = vlaneseq
        %v503 = vshrl.u32 %v502, 7
        %v504 = vsub.s32 0, %v503
        %v505 = vrot.slane %v452, %v504
        %v506 = vlaneseq
        %v507 = vshrl.u32 %v506, 7
        %v508 = vsub.s32 0, %v507
        %v509 = vrot.slane %v453, %v508
        %510 = vset.pattern.permute.xlu0 0
        %511 = vperm.xlu0 %510, %v497
        %v512 = vpop.permute.xlu0 %511
        %514 = vset.pattern.permute.xlu0 0
        %515 = vperm.xlu0 %514, %v501
        %v516 = vpop.permute.xlu0 %515
        %518 = vset.pattern.permute.xlu0 0
        %519 = vperm.xlu0 %518, %v505
        %v520 = vpop.permute.xlu0 %519
        %522 = vset.pattern.permute.xlu0 0
        %523 = vperm.xlu0 %522, %v509
        %v524 = vpop.permute.xlu0 %523
        %v526 = vld [vmem:[#allocation2] sm:$0xff]
        %v527 = vld [vmem:[#allocation2 + $0x8] sm:$0xff]
        %v528 = vld [vmem:[#allocation2 + $0x18] sm:$0xff]
        %v529 = vld [vmem:[#allocation2 + $0x20] sm:$0xff]
        %v530 = vld [vmem:[#allocation2 + $0x30] sm:$0xff]
        %v531 = vld [vmem:[#allocation2 + $0x38] sm:$0xff]
        %v532 = vld [vmem:[#allocation2 + $0x48] sm:$0xff]
        %v533 = vld [vmem:[#allocation2 + $0x50] sm:$0xff]
        %s535 = vtos %v422
        %v536 = vstv %s535
        %s539 = vtos %v423
        %v540 = vstv %s539
        %s543 = vtos %v424
        %v544 = vstv %s543
        %s547 = vtos %v425
        %v548 = vstv %s547
        %v550 = vmul.f32 %v526, %v536
        %v551 = vmul.f32 %v527, %v536
        %v552 = vmul.f32 %v528, %v540
        %v553 = vmul.f32 %v529, %v540
        %v554 = vmul.f32 %v530, %v544
        %v555 = vmul.f32 %v531, %v544
        %v556 = vmul.f32 %v532, %v548
        %v557 = vmul.f32 %v533, %v548
        %v558 = vadd.f32 %v476, %v550
        %v559 = vadd.f32 %v476, %v551
        %v560 = vadd.f32 %v480, %v552
        %v561 = vadd.f32 %v480, %v553
        %v562 = vadd.f32 %v484, %v554
        %v563 = vadd.f32 %v484, %v555
        %v564 = vadd.f32 %v488, %v556
        %v565 = vadd.f32 %v488, %v557
        %s567 = vtos %v434
        %v568 = vstv %s567
        %s571 = vtos %v435
        %v572 = vstv %s571
        %s575 = vtos %v436
        %v576 = vstv %s575
        %s579 = vtos %v437
        %v580 = vstv %s579
        %v582 = vmul.f32 %v526, %v568
        %v583 = vmul.f32 %v527, %v568
        %v584 = vmul.f32 %v528, %v572
        %v585 = vmul.f32 %v529, %v572
        %v586 = vmul.f32 %v530, %v576
        %v587 = vmul.f32 %v531, %v576
        %v588 = vmul.f32 %v532, %v580
        %v589 = vmul.f32 %v533, %v580
        %v590 = vadd.f32 %v512, %v582
        %v591 = vadd.f32 %v512, %v583
        %v592 = vadd.f32 %v516, %v584
        %v593 = vadd.f32 %v516, %v585
        %v594 = vadd.f32 %v520, %v586
        %v595 = vadd.f32 %v520, %v587
        %v596 = vadd.f32 %v524, %v588
        %v597 = vadd.f32 %v524, %v589
        %598 = vrot.lane.b32.xlu0 %v422, 127
        %v599 = vpop.permute.xlu0 %598
        %600 = vrot.lane.b32.xlu0 %v423, 127
        %v601 = vpop.permute.xlu0 %600
        %602 = vrot.lane.b32.xlu0 %v424, 127
        %v603 = vpop.permute.xlu0 %602
        %604 = vrot.lane.b32.xlu0 %v425, 127
        %v605 = vpop.permute.xlu0 %604
        %s606 = vtos %v599
        %v607 = vstv %s606
        %s609 = vtos %v601
        %v610 = vstv %s609
        %s612 = vtos %v603
        %v613 = vstv %s612
        %s615 = vtos %v605
        %v616 = vstv %s615
        %v618 = vmul.f32 %v526, %v607
        %v619 = vmul.f32 %v527, %v607
        %v620 = vmul.f32 %v528, %v610
        %v621 = vmul.f32 %v529, %v610
        %v622 = vmul.f32 %v530, %v613
        %v623 = vmul.f32 %v531, %v613
        %v624 = vmul.f32 %v532, %v616
        %v625 = vmul.f32 %v533, %v616
        %634 = vrot.lane.b32.xlu0 %v618, 127
        %v635 = vpop.permute.xlu0 %634
        %636 = vrot.lane.b32.xlu0 %v619, 127
        %v637 = vpop.permute.xlu0 %636
        %638 = vrot.lane.b32.xlu0 %v620, 127
        %v639 = vpop.permute.xlu0 %638
        %640 = vrot.lane.b32.xlu0 %v621, 127
        %v641 = vpop.permute.xlu0 %640
        %642 = vrot.lane.b32.xlu0 %v622, 127
        %v643 = vpop.permute.xlu0 %642
        %644 = vrot.lane.b32.xlu0 %v623, 127
        %v645 = vpop.permute.xlu0 %644
        %646 = vrot.lane.b32.xlu0 %v624, 127
        %v647 = vpop.permute.xlu0 %646
        %648 = vrot.lane.b32.xlu0 %v625, 127
        %v649 = vpop.permute.xlu0 %648
        %v658 = vadd.f32 %v558, %v635
        %v659 = vadd.f32 %v559, %v637
        %v660 = vadd.f32 %v560, %v639
        %v661 = vadd.f32 %v561, %v641
        %v662 = vadd.f32 %v562, %v643
        %v663 = vadd.f32 %v563, %v645
        %v664 = vadd.f32 %v564, %v647
        %v665 = vadd.f32 %v565, %v649
        %666 = vrot.lane.b32.xlu0 %v434, 127
        %v667 = vpop.permute.xlu0 %666
        %668 = vrot.lane.b32.xlu0 %v435, 127
        %v669 = vpop.permute.xlu0 %668
        %670 = vrot.lane.b32.xlu0 %v436, 127
        %v671 = vpop.permute.xlu0 %670
        %672 = vrot.lane.b32.xlu0 %v437, 127
        %v673 = vpop.permute.xlu0 %672
        %s674 = vtos %v667
        %v675 = vstv %s674
        %s677 = vtos %v669
        %v678 = vstv %s677
        %s680 = vtos %v671
        %v681 = vstv %s680
        %s683 = vtos %v673
        %v684 = vstv %s683
        %v686 = vmul.f32 %v526, %v675
        %v687 = vmul.f32 %v527, %v675
        %v688 = vmul.f32 %v528, %v678
        %v689 = vmul.f32 %v529, %v678
        %v690 = vmul.f32 %v530, %v681
        %v691 = vmul.f32 %v531, %v681
        %v692 = vmul.f32 %v532, %v684
        %v693 = vmul.f32 %v533, %v684
        %702 = vrot.lane.b32.xlu0 %v686, 127
        %v703 = vpop.permute.xlu0 %702
        %704 = vrot.lane.b32.xlu0 %v687, 127
        %v705 = vpop.permute.xlu0 %704
        %706 = vrot.lane.b32.xlu0 %v688, 127
        %v707 = vpop.permute.xlu0 %706
        %708 = vrot.lane.b32.xlu0 %v689, 127
        %v709 = vpop.permute.xlu0 %708
        %710 = vrot.lane.b32.xlu0 %v690, 127
        %v711 = vpop.permute.xlu0 %710
        %712 = vrot.lane.b32.xlu0 %v691, 127
        %v713 = vpop.permute.xlu0 %712
        %714 = vrot.lane.b32.xlu0 %v692, 127
        %v715 = vpop.permute.xlu0 %714
        %716 = vrot.lane.b32.xlu0 %v693, 127
        %v717 = vpop.permute.xlu0 %716
        %v726 = vadd.f32 %v590, %v703
        %v727 = vadd.f32 %v591, %v705
        %v728 = vadd.f32 %v592, %v707
        %v729 = vadd.f32 %v593, %v709
        %v730 = vadd.f32 %v594, %v711
        %v731 = vadd.f32 %v595, %v713
        %v732 = vadd.f32 %v596, %v715
        %v733 = vadd.f32 %v597, %v717
        %734 = vrot.lane.b32.xlu0 %v422, 126
        %v735 = vpop.permute.xlu0 %734
        %736 = vrot.lane.b32.xlu0 %v423, 126
        %v737 = vpop.permute.xlu0 %736
        %738 = vrot.lane.b32.xlu0 %v424, 126
        %v739 = vpop.permute.xlu0 %738
        %740 = vrot.lane.b32.xlu0 %v425, 126
        %v741 = vpop.permute.xlu0 %740
        %s742 = vtos %v735
        %v743 = vstv %s742
        %s745 = vtos %v737
        %v746 = vstv %s745
        %s748 = vtos %v739
        %v749 = vstv %s748
        %s751 = vtos %v741
        %v752 = vstv %s751
        %v754 = vmul.f32 %v526, %v743
        %v755 = vmul.f32 %v527, %v743
        %v756 = vmul.f32 %v528, %v746
        %v757 = vmul.f32 %v529, %v746
        %v758 = vmul.f32 %v530, %v749
        %v759 = vmul.f32 %v531, %v749
        %v760 = vmul.f32 %v532, %v752
        %v761 = vmul.f32 %v533, %v752
        %770 = vrot.lane.b32.xlu0 %v754, 126
        %v771 = vpop.permute.xlu0 %770
        %772 = vrot.lane.b32.xlu0 %v755, 126
        %v773 = vpop.permute.xlu0 %772
        %774 = vrot.lane.b32.xlu0 %v756, 126
        %v775 = vpop.permute.xlu0 %774
        %776 = vrot.lane.b32.xlu0 %v757, 126
        %v777 = vpop.permute.xlu0 %776
        %778 = vrot.lane.b32.xlu0 %v758, 126
        %v779 = vpop.permute.xlu0 %778
        %780 = vrot.lane.b32.xlu0 %v759, 126
        %v781 = vpop.permute.xlu0 %780
        %782 = vrot.lane.b32.xlu0 %v760, 126
        %v783 = vpop.permute.xlu0 %782
        %784 = vrot.lane.b32.xlu0 %v761, 126
        %v785 = vpop.permute.xlu0 %784
        %v794 = vadd.f32 %v658, %v771
        %v795 = vadd.f32 %v659, %v773
        %v796 = vadd.f32 %v660, %v775
        %v797 = vadd.f32 %v661, %v777
        %v798 = vadd.f32 %v662, %v779
        %v799 = vadd.f32 %v663, %v781
        %v800 = vadd.f32 %v664, %v783
        %v801 = vadd.f32 %v665, %v785
        %802 = vrot.lane.b32.xlu0 %v434, 126
        %v803 = vpop.permute.xlu0 %802
        %804 = vrot.lane.b32.xlu0 %v435, 126
        %v805 = vpop.permute.xlu0 %804
        %806 = vrot.lane.b32.xlu0 %v436, 126
        %v807 = vpop.permute.xlu0 %806
        %808 = vrot.lane.b32.xlu0 %v437, 126
        %v809 = vpop.permute.xlu0 %808
        %s810 = vtos %v803
        %v811 = vstv %s810
        %s813 = vtos %v805
        %v814 = vstv %s813
        %s816 = vtos %v807
        %v817 = vstv %s816
        %s819 = vtos %v809
        %v820 = vstv %s819
        %v822 = vmul.f32 %v526, %v811
        %v823 = vmul.f32 %v527, %v811
        %v824 = vmul.f32 %v528, %v814
        %v825 = vmul.f32 %v529, %v814
        %v826 = vmul.f32 %v530, %v817
        %v827 = vmul.f32 %v531, %v817
        %v828 = vmul.f32 %v532, %v820
        %v829 = vmul.f32 %v533, %v820
        %838 = vrot.lane.b32.xlu0 %v822, 126
        %v839 = vpop.permute.xlu0 %838
        %840 = vrot.lane.b32.xlu0 %v823, 126
        %v841 = vpop.permute.xlu0 %840
        %842 = vrot.lane.b32.xlu0 %v824, 126
        %v843 = vpop.permute.xlu0 %842
        %844 = vrot.lane.b32.xlu0 %v825, 126
        %v845 = vpop.permute.xlu0 %844
        %846 = vrot.lane.b32.xlu0 %v826, 126
        %v847 = vpop.permute.xlu0 %846
        %848 = vrot.lane.b32.xlu0 %v827, 126
        %v849 = vpop.permute.xlu0 %848
        %850 = vrot.lane.b32.xlu0 %v828, 126
        %v851 = vpop.permute.xlu0 %850
        %852 = vrot.lane.b32.xlu0 %v829, 126
        %v853 = vpop.permute.xlu0 %852
        %v862 = vadd.f32 %v726, %v839
        %v863 = vadd.f32 %v727, %v841
        %v864 = vadd.f32 %v728, %v843
        %v865 = vadd.f32 %v729, %v845
        %v866 = vadd.f32 %v730, %v847
        %v867 = vadd.f32 %v731, %v849
        %v868 = vadd.f32 %v732, %v851
        %v869 = vadd.f32 %v733, %v853
        %s870 = sadd.s32 0, 1
        %s871 = scalar_lea.vmem [#allocation2], %s870
        %v872 = vld [vmem:[%s871] sm:$0xff]
        %v873 = vld [vmem:[%s871 + $0x8] sm:$0xff]
        %v874 = vld [vmem:[%s871 + $0x18] sm:$0xff]
        %v875 = vld [vmem:[%s871 + $0x20] sm:$0xff]
        %v876 = vld [vmem:[%s871 + $0x30] sm:$0xff]
        %v877 = vld [vmem:[%s871 + $0x38] sm:$0xff]
        %v878 = vld [vmem:[%s871 + $0x48] sm:$0xff]
        %v879 = vld [vmem:[%s871 + $0x50] sm:$0xff]
        %s881 = vtos %v426
        %v882 = vstv %s881
        %s885 = vtos %v427
        %v886 = vstv %s885
        %s889 = vtos %v428
        %v890 = vstv %s889
        %s893 = vtos %v429
        %v894 = vstv %s893
        %v896 = vmul.f32 %v872, %v882
        %v897 = vmul.f32 %v873, %v882
        %v898 = vmul.f32 %v874, %v886
        %v899 = vmul.f32 %v875, %v886
        %v900 = vmul.f32 %v876, %v890
        %v901 = vmul.f32 %v877, %v890
        %v902 = vmul.f32 %v878, %v894
        %v903 = vmul.f32 %v879, %v894
        %v904 = vadd.f32 %v794, %v896
        %v905 = vadd.f32 %v795, %v897
        %v906 = vadd.f32 %v796, %v898
        %v907 = vadd.f32 %v797, %v899
        %v908 = vadd.f32 %v798, %v900
        %v909 = vadd.f32 %v799, %v901
        %v910 = vadd.f32 %v800, %v902
        %v911 = vadd.f32 %v801, %v903
        %s913 = vtos %v438
        %v914 = vstv %s913
        %s917 = vtos %v439
        %v918 = vstv %s917
        %s921 = vtos %v440
        %v922 = vstv %s921
        %s925 = vtos %v441
        %v926 = vstv %s925
        %v928 = vmul.f32 %v872, %v914
        %v929 = vmul.f32 %v873, %v914
        %v930 = vmul.f32 %v874, %v918
        %v931 = vmul.f32 %v875, %v918
        %v932 = vmul.f32 %v876, %v922
        %v933 = vmul.f32 %v877, %v922
        %v934 = vmul.f32 %v878, %v926
        %v935 = vmul.f32 %v879, %v926
        %v936 = vadd.f32 %v862, %v928
        %v937 = vadd.f32 %v863, %v929
        %v938 = vadd.f32 %v864, %v930
        %v939 = vadd.f32 %v865, %v931
        %v940 = vadd.f32 %v866, %v932
        %v941 = vadd.f32 %v867, %v933
        %v942 = vadd.f32 %v868, %v934
        %v943 = vadd.f32 %v869, %v935
        %944 = vrot.lane.b32.xlu0 %v426, 127
        %v945 = vpop.permute.xlu0 %944
        %946 = vrot.lane.b32.xlu0 %v427, 127
        %v947 = vpop.permute.xlu0 %946
        %948 = vrot.lane.b32.xlu0 %v428, 127
        %v949 = vpop.permute.xlu0 %948
        %950 = vrot.lane.b32.xlu0 %v429, 127
        %v951 = vpop.permute.xlu0 %950
        %s952 = vtos %v945
        %v953 = vstv %s952
        %s955 = vtos %v947
        %v956 = vstv %s955
        %s958 = vtos %v949
        %v959 = vstv %s958
        %s961 = vtos %v951
        %v962 = vstv %s961
        %v964 = vmul.f32 %v872, %v953
        %v965 = vmul.f32 %v873, %v953
        %v966 = vmul.f32 %v874, %v956
        %v967 = vmul.f32 %v875, %v956
        %v968 = vmul.f32 %v876, %v959
        %v969 = vmul.f32 %v877, %v959
        %v970 = vmul.f32 %v878, %v962
        %v971 = vmul.f32 %v879, %v962
        %980 = vrot.lane.b32.xlu0 %v964, 127
        %v981 = vpop.permute.xlu0 %980
        %982 = vrot.lane.b32.xlu0 %v965, 127
        %v983 = vpop.permute.xlu0 %982
        %984 = vrot.lane.b32.xlu0 %v966, 127
        %v985 = vpop.permute.xlu0 %984
        %986 = vrot.lane.b32.xlu0 %v967, 127
        %v987 = vpop.permute.xlu0 %986
        %988 = vrot.lane.b32.xlu0 %v968, 127
        %v989 = vpop.permute.xlu0 %988
        %990 = vrot.lane.b32.xlu0 %v969, 127
        %v991 = vpop.permute.xlu0 %990
        %992 = vrot.lane.b32.xlu0 %v970, 127
        %v993 = vpop.permute.xlu0 %992
        %994 = vrot.lane.b32.xlu0 %v971, 127
        %v995 = vpop.permute.xlu0 %994
        %v1004 = vadd.f32 %v904, %v981
        %v1005 = vadd.f32 %v905, %v983
        %v1006 = vadd.f32 %v906, %v985
        %v1007 = vadd.f32 %v907, %v987
        %v1008 = vadd.f32 %v908, %v989
        %v1009 = vadd.f32 %v909, %v991
        %v1010 = vadd.f32 %v910, %v993
        %v1011 = vadd.f32 %v911, %v995
        %1012 = vrot.lane.b32.xlu0 %v438, 127
        %v1013 = vpop.permute.xlu0 %1012
        %1014 = vrot.lane.b32.xlu0 %v439, 127
        %v1015 = vpop.permute.xlu0 %1014
        %1016 = vrot.lane.b32.xlu0 %v440, 127
        %v1017 = vpop.permute.xlu0 %1016
        %1018 = vrot.lane.b32.xlu0 %v441, 127
        %v1019 = vpop.permute.xlu0 %1018
        %s1020 = vtos %v1013
        %v1021 = vstv %s1020
        %s1023 = vtos %v1015
        %v1024 = vstv %s1023
        %s1026 = vtos %v1017
        %v1027 = vstv %s1026
        %s1029 = vtos %v1019
        %v1030 = vstv %s1029
        %v1032 = vmul.f32 %v872, %v1021
        %v1033 = vmul.f32 %v873, %v1021
        %v1034 = vmul.f32 %v874, %v1024
        %v1035 = vmul.f32 %v875, %v1024
        %v1036 = vmul.f32 %v876, %v1027
        %v1037 = vmul.f32 %v877, %v1027
        %v1038 = vmul.f32 %v878, %v1030
        %v1039 = vmul.f32 %v879, %v1030
        %1048 = vrot.lane.b32.xlu0 %v1032, 127
        %v1049 = vpop.permute.xlu0 %1048
        %1050 = vrot.lane.b32.xlu0 %v1033, 127
        %v1051 = vpop.permute.xlu0 %1050
        %1052 = vrot.lane.b32.xlu0 %v1034, 127
        %v1053 = vpop.permute.xlu0 %1052
        %1054 = vrot.lane.b32.xlu0 %v1035, 127
        %v1055 = vpop.permute.xlu0 %1054
        %1056 = vrot.lane.b32.xlu0 %v1036, 127
        %v1057 = vpop.permute.xlu0 %1056
        %1058 = vrot.lane.b32.xlu0 %v1037, 127
        %v1059 = vpop.permute.xlu0 %1058
        %1060 = vrot.lane.b32.xlu0 %v1038, 127
        %v1061 = vpop.permute.xlu0 %1060
        %1062 = vrot.lane.b32.xlu0 %v1039, 127
        %v1063 = vpop.permute.xlu0 %1062
        %v1072 = vadd.f32 %v936, %v1049
        %v1073 = vadd.f32 %v937, %v1051
        %v1074 = vadd.f32 %v938, %v1053
        %v1075 = vadd.f32 %v939, %v1055
        %v1076 = vadd.f32 %v940, %v1057
        %v1077 = vadd.f32 %v941, %v1059
        %v1078 = vadd.f32 %v942, %v1061
        %v1079 = vadd.f32 %v943, %v1063
        %1080 = vrot.lane.b32.xlu0 %v426, 126
        %v1081 = vpop.permute.xlu0 %1080
        %1082 = vrot.lane.b32.xlu0 %v427, 126
        %v1083 = vpop.permute.xlu0 %1082
        %1084 = vrot.lane.b32.xlu0 %v428, 126
        %v1085 = vpop.permute.xlu0 %1084
        %1086 = vrot.lane.b32.xlu0 %v429, 126
        %v1087 = vpop.permute.xlu0 %1086
        %s1088 = vtos %v1081
        %v1089 = vstv %s1088
        %s1091 = vtos %v1083
        %v1092 = vstv %s1091
        %s1094 = vtos %v1085
        %v1095 = vstv %s1094
        %s1097 = vtos %v1087
        %v1098 = vstv %s1097
        %v1100 = vmul.f32 %v872, %v1089
        %v1101 = vmul.f32 %v873, %v1089
        %v1102 = vmul.f32 %v874, %v1092
        %v1103 = vmul.f32 %v875, %v1092
        %v1104 = vmul.f32 %v876, %v1095
        %v1105 = vmul.f32 %v877, %v1095
        %v1106 = vmul.f32 %v878, %v1098
        %v1107 = vmul.f32 %v879, %v1098
        %1116 = vrot.lane.b32.xlu0 %v1100, 126
        %v1117 = vpop.permute.xlu0 %1116
        %1118 = vrot.lane.b32.xlu0 %v1101, 126
        %v1119 = vpop.permute.xlu0 %1118
        %1120 = vrot.lane.b32.xlu0 %v1102, 126
        %v1121 = vpop.permute.xlu0 %1120
        %1122 = vrot.lane.b32.xlu0 %v1103, 126
        %v1123 = vpop.permute.xlu0 %1122
        %1124 = vrot.lane.b32.xlu0 %v1104, 126
        %v1125 = vpop.permute.xlu0 %1124
        %1126 = vrot.lane.b32.xlu0 %v1105, 126
        %v1127 = vpop.permute.xlu0 %1126
        %1128 = vrot.lane.b32.xlu0 %v1106, 126
        %v1129 = vpop.permute.xlu0 %1128
        %1130 = vrot.lane.b32.xlu0 %v1107, 126
        %v1131 = vpop.permute.xlu0 %1130
        %v1140 = vadd.f32 %v1004, %v1117
        %v1141 = vadd.f32 %v1005, %v1119
        %v1142 = vadd.f32 %v1006, %v1121
        %v1143 = vadd.f32 %v1007, %v1123
        %v1144 = vadd.f32 %v1008, %v1125
        %v1145 = vadd.f32 %v1009, %v1127
        %v1146 = vadd.f32 %v1010, %v1129
        %v1147 = vadd.f32 %v1011, %v1131
        %1148 = vrot.lane.b32.xlu0 %v438, 126
        %v1149 = vpop.permute.xlu0 %1148
        %1150 = vrot.lane.b32.xlu0 %v439, 126
        %v1151 = vpop.permute.xlu0 %1150
        %1152 = vrot.lane.b32.xlu0 %v440, 126
        %v1153 = vpop.permute.xlu0 %1152
        %1154 = vrot.lane.b32.xlu0 %v441, 126
        %v1155 = vpop.permute.xlu0 %1154
        %s1156 = vtos %v1149
        %v1157 = vstv %s1156
        %s1159 = vtos %v1151
        %v1160 = vstv %s1159
        %s1162 = vtos %v1153
        %v1163 = vstv %s1162
        %s1165 = vtos %v1155
        %v1166 = vstv %s1165
        %v1168 = vmul.f32 %v872, %v1157
        %v1169 = vmul.f32 %v873, %v1157
        %v1170 = vmul.f32 %v874, %v1160
        %v1171 = vmul.f32 %v875, %v1160
        %v1172 = vmul.f32 %v876, %v1163
        %v1173 = vmul.f32 %v877, %v1163
        %v1174 = vmul.f32 %v878, %v1166
        %v1175 = vmul.f32 %v879, %v1166
        %1184 = vrot.lane.b32.xlu0 %v1168, 126
        %v1185 = vpop.permute.xlu0 %1184
        %1186 = vrot.lane.b32.xlu0 %v1169, 126
        %v1187 = vpop.permute.xlu0 %1186
        %1188 = vrot.lane.b32.xlu0 %v1170, 126
        %v1189 = vpop.permute.xlu0 %1188
        %1190 = vrot.lane.b32.xlu0 %v1171, 126
        %v1191 = vpop.permute.xlu0 %1190
        %1192 = vrot.lane.b32.xlu0 %v1172, 126
        %v1193 = vpop.permute.xlu0 %1192
        %1194 = vrot.lane.b32.xlu0 %v1173, 126
        %v1195 = vpop.permute.xlu0 %1194
        %1196 = vrot.lane.b32.xlu0 %v1174, 126
        %v1197 = vpop.permute.xlu0 %1196
        %1198 = vrot.lane.b32.xlu0 %v1175, 126
        %v1199 = vpop.permute.xlu0 %1198
        %v1208 = vadd.f32 %v1072, %v1185
        %v1209 = vadd.f32 %v1073, %v1187
        %v1210 = vadd.f32 %v1074, %v1189
        %v1211 = vadd.f32 %v1075, %v1191
        %v1212 = vadd.f32 %v1076, %v1193
        %v1213 = vadd.f32 %v1077, %v1195
        %v1214 = vadd.f32 %v1078, %v1197
        %v1215 = vadd.f32 %v1079, %v1199
        %s1216 = sadd.s32 0, 2
        %s1217 = scalar_lea.vmem [#allocation2], %s1216
        %v1218 = vld [vmem:[%s1217] sm:$0xff]
        %v1219 = vld [vmem:[%s1217 + $0x8] sm:$0xff]
        %v1220 = vld [vmem:[%s1217 + $0x18] sm:$0xff]
        %v1221 = vld [vmem:[%s1217 + $0x20] sm:$0xff]
        %v1222 = vld [vmem:[%s1217 + $0x30] sm:$0xff]
        %v1223 = vld [vmem:[%s1217 + $0x38] sm:$0xff]
        %v1224 = vld [vmem:[%s1217 + $0x48] sm:$0xff]
        %v1225 = vld [vmem:[%s1217 + $0x50] sm:$0xff]
        %s1227 = vtos %v430
        %v1228 = vstv %s1227
        %s1231 = vtos %v431
        %v1232 = vstv %s1231
        %s1235 = vtos %v432
        %v1236 = vstv %s1235
        %s1239 = vtos %v433
        %v1240 = vstv %s1239
        %v1242 = vmul.f32 %v1218, %v1228
        %v1243 = vmul.f32 %v1219, %v1228
        %v1244 = vmul.f32 %v1220, %v1232
        %v1245 = vmul.f32 %v1221, %v1232
        %v1246 = vmul.f32 %v1222, %v1236
        %v1247 = vmul.f32 %v1223, %v1236
        %v1248 = vmul.f32 %v1224, %v1240
        %v1249 = vmul.f32 %v1225, %v1240
        %v1250 = vadd.f32 %v1140, %v1242
        %v1251 = vadd.f32 %v1141, %v1243
        %v1252 = vadd.f32 %v1142, %v1244
        %v1253 = vadd.f32 %v1143, %v1245
        %v1254 = vadd.f32 %v1144, %v1246
        %v1255 = vadd.f32 %v1145, %v1247
        %v1256 = vadd.f32 %v1146, %v1248
        %v1257 = vadd.f32 %v1147, %v1249
        %s1259 = vtos %v442
        %v1260 = vstv %s1259
        %s1263 = vtos %v443
        %v1264 = vstv %s1263
        %s1267 = vtos %v444
        %v1268 = vstv %s1267
        %s1271 = vtos %v445
        %v1272 = vstv %s1271
        %v1274 = vmul.f32 %v1218, %v1260
        %v1275 = vmul.f32 %v1219, %v1260
        %v1276 = vmul.f32 %v1220, %v1264
        %v1277 = vmul.f32 %v1221, %v1264
        %v1278 = vmul.f32 %v1222, %v1268
        %v1279 = vmul.f32 %v1223, %v1268
        %v1280 = vmul.f32 %v1224, %v1272
        %v1281 = vmul.f32 %v1225, %v1272
        %v1282 = vadd.f32 %v1208, %v1274
        %v1283 = vadd.f32 %v1209, %v1275
        %v1284 = vadd.f32 %v1210, %v1276
        %v1285 = vadd.f32 %v1211, %v1277
        %v1286 = vadd.f32 %v1212, %v1278
        %v1287 = vadd.f32 %v1213, %v1279
        %v1288 = vadd.f32 %v1214, %v1280
        %v1289 = vadd.f32 %v1215, %v1281
        %1290 = vrot.lane.b32.xlu0 %v430, 127
        %v1291 = vpop.permute.xlu0 %1290
        %1292 = vrot.lane.b32.xlu0 %v431, 127
        %v1293 = vpop.permute.xlu0 %1292
        %1294 = vrot.lane.b32.xlu0 %v432, 127
        %v1295 = vpop.permute.xlu0 %1294
        %1296 = vrot.lane.b32.xlu0 %v433, 127
        %v1297 = vpop.permute.xlu0 %1296
        %s1298 = vtos %v1291
        %v1299 = vstv %s1298
        %s1301 = vtos %v1293
        %v1302 = vstv %s1301
        %s1304 = vtos %v1295
        %v1305 = vstv %s1304
        %s1307 = vtos %v1297
        %v1308 = vstv %s1307
        %v1310 = vmul.f32 %v1218, %v1299
        %v1311 = vmul.f32 %v1219, %v1299
        %v1312 = vmul.f32 %v1220, %v1302
        %v1313 = vmul.f32 %v1221, %v1302
        %v1314 = vmul.f32 %v1222, %v1305
        %v1315 = vmul.f32 %v1223, %v1305
        %v1316 = vmul.f32 %v1224, %v1308
        %v1317 = vmul.f32 %v1225, %v1308
        %1326 = vrot.lane.b32.xlu0 %v1310, 127
        %v1327 = vpop.permute.xlu0 %1326
        %1328 = vrot.lane.b32.xlu0 %v1311, 127
        %v1329 = vpop.permute.xlu0 %1328
        %1330 = vrot.lane.b32.xlu0 %v1312, 127
        %v1331 = vpop.permute.xlu0 %1330
        %1332 = vrot.lane.b32.xlu0 %v1313, 127
        %v1333 = vpop.permute.xlu0 %1332
        %1334 = vrot.lane.b32.xlu0 %v1314, 127
        %v1335 = vpop.permute.xlu0 %1334
        %1336 = vrot.lane.b32.xlu0 %v1315, 127
        %v1337 = vpop.permute.xlu0 %1336
        %1338 = vrot.lane.b32.xlu0 %v1316, 127
        %v1339 = vpop.permute.xlu0 %1338
        %1340 = vrot.lane.b32.xlu0 %v1317, 127
        %v1341 = vpop.permute.xlu0 %1340
        %v1350 = vadd.f32 %v1250, %v1327
        %v1351 = vadd.f32 %v1251, %v1329
        %v1352 = vadd.f32 %v1252, %v1331
        %v1353 = vadd.f32 %v1253, %v1333
        %v1354 = vadd.f32 %v1254, %v1335
        %v1355 = vadd.f32 %v1255, %v1337
        %v1356 = vadd.f32 %v1256, %v1339
        %v1357 = vadd.f32 %v1257, %v1341
        %1358 = vrot.lane.b32.xlu0 %v442, 127
        %v1359 = vpop.permute.xlu0 %1358
        %1360 = vrot.lane.b32.xlu0 %v443, 127
        %v1361 = vpop.permute.xlu0 %1360
        %1362 = vrot.lane.b32.xlu0 %v444, 127
        %v1363 = vpop.permute.xlu0 %1362
        %1364 = vrot.lane.b32.xlu0 %v445, 127
        %v1365 = vpop.permute.xlu0 %1364
        %s1366 = vtos %v1359
        %v1367 = vstv %s1366
        %s1369 = vtos %v1361
        %v1370 = vstv %s1369
        %s1372 = vtos %v1363
        %v1373 = vstv %s1372
        %s1375 = vtos %v1365
        %v1376 = vstv %s1375
        %v1378 = vmul.f32 %v1218, %v1367
        %v1379 = vmul.f32 %v1219, %v1367
        %v1380 = vmul.f32 %v1220, %v1370
        %v1381 = vmul.f32 %v1221, %v1370
        %v1382 = vmul.f32 %v1222, %v1373
        %v1383 = vmul.f32 %v1223, %v1373
        %v1384 = vmul.f32 %v1224, %v1376
        %v1385 = vmul.f32 %v1225, %v1376
        %1394 = vrot.lane.b32.xlu0 %v1378, 127
        %v1395 = vpop.permute.xlu0 %1394
        %1396 = vrot.lane.b32.xlu0 %v1379, 127
        %v1397 = vpop.permute.xlu0 %1396
        %1398 = vrot.lane.b32.xlu0 %v1380, 127
        %v1399 = vpop.permute.xlu0 %1398
        %1400 = vrot.lane.b32.xlu0 %v1381, 127
        %v1401 = vpop.permute.xlu0 %1400
        %1402 = vrot.lane.b32.xlu0 %v1382, 127
        %v1403 = vpop.permute.xlu0 %1402
        %1404 = vrot.lane.b32.xlu0 %v1383, 127
        %v1405 = vpop.permute.xlu0 %1404
        %1406 = vrot.lane.b32.xlu0 %v1384, 127
        %v1407 = vpop.permute.xlu0 %1406
        %1408 = vrot.lane.b32.xlu0 %v1385, 127
        %v1409 = vpop.permute.xlu0 %1408
        %v1418 = vadd.f32 %v1282, %v1395
        %v1419 = vadd.f32 %v1283, %v1397
        %v1420 = vadd.f32 %v1284, %v1399
        %v1421 = vadd.f32 %v1285, %v1401
        %v1422 = vadd.f32 %v1286, %v1403
        %v1423 = vadd.f32 %v1287, %v1405
        %v1424 = vadd.f32 %v1288, %v1407
        %v1425 = vadd.f32 %v1289, %v1409
        %1426 = vrot.lane.b32.xlu0 %v430, 126
        %v1427 = vpop.permute.xlu0 %1426
        %1428 = vrot.lane.b32.xlu0 %v431, 126
        %v1429 = vpop.permute.xlu0 %1428
        %1430 = vrot.lane.b32.xlu0 %v432, 126
        %v1431 = vpop.permute.xlu0 %1430
        %1432 = vrot.lane.b32.xlu0 %v433, 126
        %v1433 = vpop.permute.xlu0 %1432
        %s1434 = vtos %v1427
        %v1435 = vstv %s1434
        %s1437 = vtos %v1429
        %v1438 = vstv %s1437
        %s1440 = vtos %v1431
        %v1441 = vstv %s1440
        %s1443 = vtos %v1433
        %v1444 = vstv %s1443
        %v1446 = vmul.f32 %v1218, %v1435
        %v1447 = vmul.f32 %v1219, %v1435
        %v1448 = vmul.f32 %v1220, %v1438
        %v1449 = vmul.f32 %v1221, %v1438
        %v1450 = vmul.f32 %v1222, %v1441
        %v1451 = vmul.f32 %v1223, %v1441
        %v1452 = vmul.f32 %v1224, %v1444
        %v1453 = vmul.f32 %v1225, %v1444
        %1462 = vrot.lane.b32.xlu0 %v1446, 126
        %v1463 = vpop.permute.xlu0 %1462
        %1464 = vrot.lane.b32.xlu0 %v1447, 126
        %v1465 = vpop.permute.xlu0 %1464
        %1466 = vrot.lane.b32.xlu0 %v1448, 126
        %v1467 = vpop.permute.xlu0 %1466
        %1468 = vrot.lane.b32.xlu0 %v1449, 126
        %v1469 = vpop.permute.xlu0 %1468
        %1470 = vrot.lane.b32.xlu0 %v1450, 126
        %v1471 = vpop.permute.xlu0 %1470
        %1472 = vrot.lane.b32.xlu0 %v1451, 126
        %v1473 = vpop.permute.xlu0 %1472
        %1474 = vrot.lane.b32.xlu0 %v1452, 126
        %v1475 = vpop.permute.xlu0 %1474
        %1476 = vrot.lane.b32.xlu0 %v1453, 126
        %v1477 = vpop.permute.xlu0 %1476
        %v1486 = vadd.f32 %v1350, %v1463
        %v1487 = vadd.f32 %v1351, %v1465
        %v1488 = vadd.f32 %v1352, %v1467
        %v1489 = vadd.f32 %v1353, %v1469
        %v1490 = vadd.f32 %v1354, %v1471
        %v1491 = vadd.f32 %v1355, %v1473
        %v1492 = vadd.f32 %v1356, %v1475
        %v1493 = vadd.f32 %v1357, %v1477
        %1494 = vrot.lane.b32.xlu0 %v442, 126
        %v1495 = vpop.permute.xlu0 %1494
        %1496 = vrot.lane.b32.xlu0 %v443, 126
        %v1497 = vpop.permute.xlu0 %1496
        %1498 = vrot.lane.b32.xlu0 %v444, 126
        %v1499 = vpop.permute.xlu0 %1498
        %1500 = vrot.lane.b32.xlu0 %v445, 126
        %v1501 = vpop.permute.xlu0 %1500
        %s1502 = vtos %v1495
        %v1503 = vstv %s1502
        %s1505 = vtos %v1497
        %v1506 = vstv %s1505
        %s1508 = vtos %v1499
        %v1509 = vstv %s1508
        %s1511 = vtos %v1501
        %v1512 = vstv %s1511
        %v1514 = vmul.f32 %v1218, %v1503
        %v1515 = vmul.f32 %v1219, %v1503
        %v1516 = vmul.f32 %v1220, %v1506
        %v1517 = vmul.f32 %v1221, %v1506
        %v1518 = vmul.f32 %v1222, %v1509
        %v1519 = vmul.f32 %v1223, %v1509
        %v1520 = vmul.f32 %v1224, %v1512
        %v1521 = vmul.f32 %v1225, %v1512
        %1530 = vrot.lane.b32.xlu0 %v1514, 126
        %v1531 = vpop.permute.xlu0 %1530
        %1532 = vrot.lane.b32.xlu0 %v1515, 126
        %v1533 = vpop.permute.xlu0 %1532
        %1534 = vrot.lane.b32.xlu0 %v1516, 126
        %v1535 = vpop.permute.xlu0 %1534
        %1536 = vrot.lane.b32.xlu0 %v1517, 126
        %v1537 = vpop.permute.xlu0 %1536
        %1538 = vrot.lane.b32.xlu0 %v1518, 126
        %v1539 = vpop.permute.xlu0 %1538
        %1540 = vrot.lane.b32.xlu0 %v1519, 126
        %v1541 = vpop.permute.xlu0 %1540
        %1542 = vrot.lane.b32.xlu0 %v1520, 126
        %v1543 = vpop.permute.xlu0 %1542
        %1544 = vrot.lane.b32.xlu0 %v1521, 126
        %v1545 = vpop.permute.xlu0 %1544
        %v1554 = vadd.f32 %v1418, %v1531
        %v1555 = vadd.f32 %v1419, %v1533
        %v1556 = vadd.f32 %v1420, %v1535
        %v1557 = vadd.f32 %v1421, %v1537
        %v1558 = vadd.f32 %v1422, %v1539
        %v1559 = vadd.f32 %v1423, %v1541
        %v1560 = vadd.f32 %v1424, %v1543
        %v1561 = vadd.f32 %v1425, %v1545
        %v1562 = vmul.f32 %v1486, 0.5
        %v1563 = vmul.f32 %v1487, 0.5
        %v1564 = vmul.f32 %v1488, 0.5
        %v1565 = vmul.f32 %v1489, 0.5
        %v1566 = vmul.f32 %v1490, 0.5
        %v1567 = vmul.f32 %v1491, 0.5
        %v1568 = vmul.f32 %v1492, 0.5
        %v1569 = vmul.f32 %v1493, 0.5
        %v1570 = vtanh.pop %v1562
        %v1571 = vtanh.pop %v1563
        %v1572 = vtanh.pop %v1564
        %v1573 = vtanh.pop %v1565
        %v1574 = vtanh.pop %v1566
        %v1575 = vtanh.pop %v1567
        %v1576 = vtanh.pop %v1568
        %v1577 = vtanh.pop %v1569
        %v1578 = vmul.f32 %v1570, 0.5
        %v1579 = vmul.f32 %v1571, 0.5
        %v1580 = vmul.f32 %v1572, 0.5
        %v1581 = vmul.f32 %v1573, 0.5
        %v1582 = vmul.f32 %v1574, 0.5
        %v1583 = vmul.f32 %v1575, 0.5
        %v1584 = vmul.f32 %v1576, 0.5
        %v1585 = vmul.f32 %v1577, 0.5
        %v1586 = vadd.f32 %v1578, 0.5
        %v1587 = vadd.f32 %v1579, 0.5
        %v1588 = vadd.f32 %v1580, 0.5
        %v1589 = vadd.f32 %v1581, 0.5
        %v1590 = vadd.f32 %v1582, 0.5
        %v1591 = vadd.f32 %v1583, 0.5
        %v1592 = vadd.f32 %v1584, 0.5
        %v1593 = vadd.f32 %v1585, 0.5
        %1602 = vrot.lane.b32.xlu0 %v872, 127
        %v1603 = vpop.permute.xlu0 %1602
        %1604 = vrot.lane.b32.xlu0 %v873, 127
        %v1605 = vpop.permute.xlu0 %1604
        %1606 = vrot.lane.b32.xlu0 %v874, 127
        %v1607 = vpop.permute.xlu0 %1606
        %1608 = vrot.lane.b32.xlu0 %v875, 127
        %v1609 = vpop.permute.xlu0 %1608
        %1610 = vrot.lane.b32.xlu0 %v876, 127
        %v1611 = vpop.permute.xlu0 %1610
        %1612 = vrot.lane.b32.xlu0 %v877, 127
        %v1613 = vpop.permute.xlu0 %1612
        %1614 = vrot.lane.b32.xlu0 %v878, 127
        %v1615 = vpop.permute.xlu0 %1614
        %1616 = vrot.lane.b32.xlu0 %v879, 127
        %v1617 = vpop.permute.xlu0 %1616
        %v1626 = vmul.f32 %v1586, %v1603
        %v1627 = vmul.f32 %v1587, %v1605
        %v1628 = vmul.f32 %v1588, %v1607
        %v1629 = vmul.f32 %v1589, %v1609
        %v1630 = vmul.f32 %v1590, %v1611
        %v1631 = vmul.f32 %v1591, %v1613
        %v1632 = vmul.f32 %v1592, %v1615
        %v1633 = vmul.f32 %v1593, %v1617
        %v1634 = vadd.f32 %v1626, %v1554
        %v1635 = vadd.f32 %v1627, %v1555
        %v1636 = vadd.f32 %v1628, %v1556
        %v1637 = vadd.f32 %v1629, %v1557
        %v1638 = vadd.f32 %v1630, %v1558
        %v1639 = vadd.f32 %v1631, %v1559
        %v1640 = vadd.f32 %v1632, %v1560
        %v1641 = vadd.f32 %v1633, %v1561
        %vm1642 = vcmask 130048
        %1643 = vst.msk [vmem:[%s321] sm:$0xff] %vm1642, %v1634
        %1644 = vst.msk [vmem:[%s321 + $0x8] sm:$0xff] %vm1642, %v1635
        %1645 = vst.msk [vmem:[%s321 + $0x10] sm:$0xff] %vm1642, %v1636
        %1646 = vst.msk [vmem:[%s321 + $0x18] sm:$0xff] %vm1642, %v1637
        %1647 = vst.msk [vmem:[%s321 + $0x20] sm:$0xff] %vm1642, %v1638
        %1648 = vst.msk [vmem:[%s321 + $0x28] sm:$0xff] %vm1642, %v1639
        %1649 = vst.msk [vmem:[%s321 + $0x30] sm:$0xff] %vm1642, %v1640
        %1650 = vst.msk [vmem:[%s321 + $0x38] sm:$0xff] %vm1642, %v1641
        %s1651 = sand.u32 %s176, 1
        %s1652 = scalar_lea.sflag [#allocation5], %s1651
        %s1653 = sand.u32 %s176, 1
        %s1654 = smul.addr %s1653, 64
        %s1655 = scalar_lea.vmem [#allocation6], %s1654
        // Predicated region
        $region45: #{tpu_custom_call.1} parent=39 // pred_check
          %p1656 = pneg %p186
        $region46: #{tpu_custom_call.1} parent=39 // pred_check_branch
          %1658 = sbr.rel (%p1656) target = $region48
        $region47: #{tpu_custom_call.1} parent=39 // pred_region
          %s1659 = smul.u32 4, %s26
          %s1661 = ssub.s32 1024, 1024
          %1662 = vsyncadd %s1652, %s1661
          %s1663 = smul.addr %s1659, 2
          %s1664 = smul.addr %s27, 8
          %s1665 = sadd.s32 %s1663, %s1664
          %s1666 = smul.addr %s1665, 128
          %s1667 = scalar_lea.hbm %s5, %s1666
          %s1668 = sshll.u32 %s1655, 4
          %s1669 = int_to_ptr.vmem [resolvable:$true] %s1668
          %1674 = dma.vmem_to_hbm [thread:$0]  %s1669, 1024, %s1667, %s1652, 128, 128, 8
        $region48: #{tpu_custom_call.1} parent=39 // pred_fallthru
          _
      $region40: #{tpu_custom_call.1} parent=5 // pred_fallthru
        _
      %p1675 = scmp.le.s32.totalorder 2, %s17
      // Predicated region
      $region49: #{tpu_custom_call.1} parent=5 // pred_check
        %p1676 = pneg %p1675
      $region50: #{tpu_custom_call.1} parent=5 // pred_check_branch
        %1678 = sbr.rel (%p1676) target = $region52
      $region51: #{tpu_custom_call.1} parent=5 // pred_region
        %s1679 = ssub.s32 %s17, 2
        // Predicated region
        $region53: #{tpu_custom_call.1} parent=51 // pred_check
          %p1680 = pneg %p192
        $region54: #{tpu_custom_call.1} parent=51 // pred_check_branch
          %1682 = sbr.rel (%p1680) target = $region56
        $region55: #{tpu_custom_call.1} parent=51 // pred_region
          %s1683 = sand.u32 %s177, 1
          %s1684 = scalar_lea.sflag [#allocation5], %s1683
          %s1685 = sand.u32 %s177, 1
          %s1686 = smul.addr %s1685, 64
          %s1687 = scalar_lea.vmem [#allocation6], %s1686
          %1688 = dma.done %s1684, 1024
        $region56: #{tpu_custom_call.1} parent=51 // pred_fallthru
          _
      $region52: #{tpu_custom_call.1} parent=5 // pred_fallthru
        _
    $region6: #{tpu_custom_call.1} parent=1 // loop_footer
      %s21 = sadd.s32 1, %s17
    $region7: #{tpu_custom_call.1} parent=1 // loop_footer_branch
      %16 = sbr.rel target = $region3
    $region8: #{tpu_custom_call.1} parent=1 // loop_exit
      _
    %1689 = vsyncpa [#allocation4], 1
    %s1690 = scalar_lea.sflag [#allocation4], 1
    %1691 = vsyncpa %s1690, 1
    %1692 = vsyncpa [#allocation5], 1
    %s1693 = scalar_lea.sflag [#allocation5], 1
    %1694 = vsyncpa %s1693, 1

</llo_original>
